<compile_context>
chip_gen: v6e
topology: v6e:2x2x1
jax: 0.10.0
libtpu: 0.0.40
codegen_flags: <defaults>
</compile_context>

<pallas_src>
import math

import numpy as np
import jax
import jax.numpy as jnp
from jax import lax
from jax.experimental import pallas as pl
from jax.experimental.pallas import tpu as pltpu

C_IN, C_OUT, K = 3, 6, 3
STRIDE = (2, 2)
PADDING = (28, 29)
DILATION = (2, 2)
W_PAD = 128            # lane-dense output width (multiple of 128)


def _make_kernel(h_out, n_r, n_c, base_h, base_w, p0_h, p0_w):
    """Build the kernel body; all sizes/offsets are static Python ints."""
    KK = K * K

    def kernel(x_ref, w_ref, b_ref, o_ref):
        # x_ref : VMEM (C_IN, H, W)                 raw input planes
        # w_ref : SMEM (C_IN*C_OUT*K*K,)            raw PyTorch (ic, oc, kh, kw) order
        # b_ref : SMEM (C_OUT,)                     bias
        # o_ref : VMEM (C_OUT, h_out, W_PAD)        lane-dense; cols >= w_out = padding

        # ---- 1. tap accumulation on the active grid (VPU) -------------------
        # Each tap window is loaded once and shared by all C_OUT accumulators.
        accs = [jnp.zeros((n_r, n_c), jnp.float32) for _ in range(C_OUT)]
        for ic in range(C_IN):
            for kh in range(K):
                for kw in range(K):
                    xs = x_ref[ic,
                               base_h + kh: base_h + kh + n_r,
                               base_w + kw: base_w + kw + n_c]       # (n_r, n_c)
                    # transposed conv == correlation with the flipped kernel
                    off = ic * C_OUT * KK + (K - 1 - kh) * K + (K - 1 - kw)
                    for oc in range(C_OUT):
                        accs[oc] = accs[oc] + w_ref[off + oc * KK] * xs

        # ---- 2. constant 0/1 expansion matrices (built from iota) -----------
        # Rt[oh, r] = 1 iff oh == 2*r + p0_h   (dilate active rows into h_out rows)
        # Cm[c, ow] = 1 iff ow == 2*c + p0_w   (dilate active cols into W_PAD lanes)
        oh_i = lax.broadcasted_iota(jnp.int32, (h_out, n_r), 0)
        r_i = lax.broadcasted_iota(jnp.int32, (h_out, n_r), 1)
        Rt = jnp.where(oh_i == 2 * r_i + p0_h, 1.0, 0.0).astype(jnp.float32)
        c_i = lax.broadcasted_iota(jnp.int32, (n_c, W_PAD), 0)
        ow_i = lax.broadcasted_iota(jnp.int32, (n_c, W_PAD), 1)
        Cm = jnp.where(ow_i == 2 * c_i + p0_w, 1.0, 0.0).astype(jnp.float32)

        # ---- 3. expand (MXU) + bias + tanh (EUP), dense 128-lane stores -----
        for oc in range(C_OUT):
            act = jnp.dot(accs[oc], Cm, preferred_element_type=jnp.float32)   # (n_r, W_PAD)
            full = jnp.dot(Rt, act, preferred_element_type=jnp.float32)       # (h_out, W_PAD)
            o_ref[oc, :, :] = jnp.tanh(full + b_ref[oc])

    return kernel


@jax.jit
def conv_transpose_tanh(x, weight, bias):
    """x: (1, C_IN, H, W) NCHW; weight: (C_IN, C_OUT, K, K) (PyTorch layout); bias: (C_OUT,)."""
    n, cin, h, w = x.shape
    assert n == 1 and cin == C_IN
    sh, sw = STRIDE
    ph, pw = PADDING
    dh, dw = DILATION
    assert (sh, sw) == (2, 2) and (dh, dw) == (2, 2)   # parity-specialised kernel

    h_out = (h - 1) * sh - 2 * ph + dh * (K - 1) + 1
    w_out = (w - 1) * sw - 2 * pw + dw * (K - 1) + 1
    assert h_out > 0 and w_out > 0, "output size must be positive"
    assert w_out <= W_PAD

    # Parity of the active output rows / cols (all other outputs are tanh(bias)).
    p0_h, p0_w = ph % 2, pw % 2
    n_r = (h_out - 1 - p0_h) // 2 + 1          # number of active rows
    n_c = (w_out - 1 - p0_w) // 2 + 1          # number of active cols
    # Input row/col read by active output (r, c) with flipped tap (kh, kw):
    #   ih = base_h + r + kh,  iw = base_w + c + kw
    base_h = (p0_h + ph) // 2 - (K - 1)
    base_w = (p0_w + pw) // 2 - (K - 1)
    # All taps must be in-bounds (no boundary clipping) for the uniform formula.
    assert 0 <= base_h and base_h + (n_r - 1) + (K - 1) < h
    assert 0 <= base_w and base_w + (n_c - 1) + (K - 1) < w

    out = pl.pallas_call(
        _make_kernel(h_out, n_r, n_c, base_h, base_w, p0_h, p0_w),
        out_shape=jax.ShapeDtypeStruct((C_OUT, h_out, W_PAD), jnp.float32),
        in_specs=[
            pl.BlockSpec(memory_space=pltpu.MemorySpace.VMEM),
            pl.BlockSpec(memory_space=pltpu.MemorySpace.SMEM),
            pl.BlockSpec(memory_space=pltpu.MemorySpace.SMEM),
        ],
        out_specs=pl.BlockSpec(memory_space=pltpu.MemorySpace.VMEM),
    )(x[0].astype(jnp.float32),
      weight.astype(jnp.float32).reshape(-1),
      bias.astype(jnp.float32))

    return out[None, :, :, :w_out]             # (1, C_OUT, h_out, w_out)


def _reference(x, weight, bias):
    """Direct scatter-form ConvTranspose2d + tanh in numpy (ground truth)."""
    x = np.asarray(x, np.float32)
    weight = np.asarray(weight, np.float32)
    bias = np.asarray(bias, np.float32)
    n, cin, h, w = x.shape
    _, cout, kh_, kw_ = weight.shape
    h_out = (h - 1) * STRIDE[0] - 2 * PADDING[0] + DILATION[0] * (kh_ - 1) + 1
    w_out = (w - 1) * STRIDE[1] - 2 * PADDING[1] + DILATION[1] * (kw_ - 1) + 1
    out = np.zeros((n, cout, h_out, w_out), np.float32)
    for kh in range(kh_):
        for kw in range(kw_):
            wmat = weight[:, :, kh, kw]                     # (Cin, Cout)
            for ih in range(h):
                oh = ih * STRIDE[0] - PADDING[0] + kh * DILATION[0]
                if not (0 <= oh < h_out):
                    continue
                for iw in range(w):
                    ow = iw * STRIDE[1] - PADDING[1] + kw * DILATION[1]
                    if not (0 <= ow < w_out):
                        continue
                    out[:, :, oh, ow] += x[:, :, ih, iw] @ wmat
    out += bias[None, :, None, None]
    return np.tanh(out)


if __name__ == "__main__":
    key = jax.random.PRNGKey(0)
    kx, kw, kb = jax.random.split(key, 3)

    # deterministic parameters (shapes from the module's __init__)
    fan_in = C_OUT * K * K
    bound = 1.0 / math.sqrt(fan_in)
    weight = jax.random.uniform(kw, (C_IN, C_OUT, K, K), jnp.float32, -bound, bound)
    bias = jax.random.uniform(kb, (C_OUT,), jnp.float32, -bound, bound)

    # input (spatial size chosen so the op is well defined; see NOTE above)
    x = jax.random.normal(kx, (1, C_IN, 32, 32), jnp.float32)

    y = conv_transpose_tanh(x, weight, bias)
    y = jax.block_until_ready(y)

    ref = _reference(np.asarray(x), np.asarray(weight), np.asarray(bias))
    assert y.shape == ref.shape, (y.shape, ref.shape)
    np.testing.assert_allclose(np.asarray(y), ref, rtol=1e-4, atol=1e-4)

    print("KERNEL_OK")
</pallas_src>

<mosaic_0001>
module attributes {stable_mosaic.version = 11 : i64} {
  func.func @kernel(%arg0: memref<3x32x32xf32, #tpu.memory_space<vmem>>, %arg1: memref<162xf32, #tpu.memory_space<smem>>, %arg2: memref<6xf32, #tpu.memory_space<smem>>, %arg3: memref<6x11x128xf32, #tpu.memory_space<vmem>>) attributes {dimension_semantics = [], scalar_prefetch = 0 : i64, scratch_operands = 0 : i64, tpu.core_type = #tpu.core_type<tc>} {
    %cst = arith.constant 0.000000e+00 : f32
    %0 = vector.broadcast %cst : f32 to vector<6x4xf32>
    %cst_0 = arith.constant 0.000000e+00 : f32
    %1 = vector.broadcast %cst_0 : f32 to vector<6x4xf32>
    %cst_1 = arith.constant 0.000000e+00 : f32
    %2 = vector.broadcast %cst_1 : f32 to vector<6x4xf32>
    %cst_2 = arith.constant 0.000000e+00 : f32
    %3 = vector.broadcast %cst_2 : f32 to vector<6x4xf32>
    %cst_3 = arith.constant 0.000000e+00 : f32
    %4 = vector.broadcast %cst_3 : f32 to vector<6x4xf32>
    %cst_4 = arith.constant 0.000000e+00 : f32
    %5 = vector.broadcast %cst_4 : f32 to vector<6x4xf32>
    %c0 = arith.constant 0 : index
    %c12 = arith.constant 12 : index
    %c13 = arith.constant 13 : index
    %6 = vector.load %arg0[%c0, %c12, %c13] : memref<3x32x32xf32, #tpu.memory_space<vmem>>, vector<1x6x4xf32>
    %7 = vector.shape_cast %6 : vector<1x6x4xf32> to vector<6x4xf32>
    %c8 = arith.constant 8 : index
    %8 = memref.load %arg1[%c8] : memref<162xf32, #tpu.memory_space<smem>>
    %9 = vector.broadcast %8 : f32 to vector<6x4xf32>
    %10 = arith.mulf %9, %7 : vector<6x4xf32>
    %11 = arith.addf %0, %10 : vector<6x4xf32>
    %c17 = arith.constant 17 : index
    %12 = memref.load %arg1[%c17] : memref<162xf32, #tpu.memory_space<smem>>
    %13 = vector.broadcast %12 : f32 to vector<6x4xf32>
    %14 = arith.mulf %13, %7 : vector<6x4xf32>
    %15 = arith.addf %1, %14 : vector<6x4xf32>
    %c26 = arith.constant 26 : index
    %16 = memref.load %arg1[%c26] : memref<162xf32, #tpu.memory_space<smem>>
    %17 = vector.broadcast %16 : f32 to vector<6x4xf32>
    %18 = arith.mulf %17, %7 : vector<6x4xf32>
    %19 = arith.addf %2, %18 : vector<6x4xf32>
    %c35 = arith.constant 35 : index
    %20 = memref.load %arg1[%c35] : memref<162xf32, #tpu.memory_space<smem>>
    %21 = vector.broadcast %20 : f32 to vector<6x4xf32>
    %22 = arith.mulf %21, %7 : vector<6x4xf32>
    %23 = arith.addf %3, %22 : vector<6x4xf32>
    %c44 = arith.constant 44 : index
    %24 = memref.load %arg1[%c44] : memref<162xf32, #tpu.memory_space<smem>>
    %25 = vector.broadcast %24 : f32 to vector<6x4xf32>
    %26 = arith.mulf %25, %7 : vector<6x4xf32>
    %27 = arith.addf %4, %26 : vector<6x4xf32>
    %c53 = arith.constant 53 : index
    %28 = memref.load %arg1[%c53] : memref<162xf32, #tpu.memory_space<smem>>
    %29 = vector.broadcast %28 : f32 to vector<6x4xf32>
    %30 = arith.mulf %29, %7 : vector<6x4xf32>
    %31 = arith.addf %5, %30 : vector<6x4xf32>
    %c0_5 = arith.constant 0 : index
    %c12_6 = arith.constant 12 : index
    %c14 = arith.constant 14 : index
    %32 = vector.load %arg0[%c0_5, %c12_6, %c14] : memref<3x32x32xf32, #tpu.memory_space<vmem>>, vector<1x6x4xf32>
    %33 = vector.shape_cast %32 : vector<1x6x4xf32> to vector<6x4xf32>
    %c7 = arith.constant 7 : index
    %34 = memref.load %arg1[%c7] : memref<162xf32, #tpu.memory_space<smem>>
    %35 = vector.broadcast %34 : f32 to vector<6x4xf32>
    %36 = arith.mulf %35, %33 : vector<6x4xf32>
    %37 = arith.addf %11, %36 : vector<6x4xf32>
    %c16 = arith.constant 16 : index
    %38 = memref.load %arg1[%c16] : memref<162xf32, #tpu.memory_space<smem>>
    %39 = vector.broadcast %38 : f32 to vector<6x4xf32>
    %40 = arith.mulf %39, %33 : vector<6x4xf32>
    %41 = arith.addf %15, %40 : vector<6x4xf32>
    %c25 = arith.constant 25 : index
    %42 = memref.load %arg1[%c25] : memref<162xf32, #tpu.memory_space<smem>>
    %43 = vector.broadcast %42 : f32 to vector<6x4xf32>
    %44 = arith.mulf %43, %33 : vector<6x4xf32>
    %45 = arith.addf %19, %44 : vector<6x4xf32>
    %c34 = arith.constant 34 : index
    %46 = memref.load %arg1[%c34] : memref<162xf32, #tpu.memory_space<smem>>
    %47 = vector.broadcast %46 : f32 to vector<6x4xf32>
    %48 = arith.mulf %47, %33 : vector<6x4xf32>
    %49 = arith.addf %23, %48 : vector<6x4xf32>
    %c43 = arith.constant 43 : index
    %50 = memref.load %arg1[%c43] : memref<162xf32, #tpu.memory_space<smem>>
    %51 = vector.broadcast %50 : f32 to vector<6x4xf32>
    %52 = arith.mulf %51, %33 : vector<6x4xf32>
    %53 = arith.addf %27, %52 : vector<6x4xf32>
    %c52 = arith.constant 52 : index
    %54 = memref.load %arg1[%c52] : memref<162xf32, #tpu.memory_space<smem>>
    %55 = vector.broadcast %54 : f32 to vector<6x4xf32>
    %56 = arith.mulf %55, %33 : vector<6x4xf32>
    %57 = arith.addf %31, %56 : vector<6x4xf32>
    %c0_7 = arith.constant 0 : index
    %c12_8 = arith.constant 12 : index
    %c15 = arith.constant 15 : index
    %58 = vector.load %arg0[%c0_7, %c12_8, %c15] : memref<3x32x32xf32, #tpu.memory_space<vmem>>, vector<1x6x4xf32>
    %59 = vector.shape_cast %58 : vector<1x6x4xf32> to vector<6x4xf32>
    %c6 = arith.constant 6 : index
    %60 = memref.load %arg1[%c6] : memref<162xf32, #tpu.memory_space<smem>>
    %61 = vector.broadcast %60 : f32 to vector<6x4xf32>
    %62 = arith.mulf %61, %59 : vector<6x4xf32>
    %63 = arith.addf %37, %62 : vector<6x4xf32>
    %c15_9 = arith.constant 15 : index
    %64 = memref.load %arg1[%c15_9] : memref<162xf32, #tpu.memory_space<smem>>
    %65 = vector.broadcast %64 : f32 to vector<6x4xf32>
    %66 = arith.mulf %65, %59 : vector<6x4xf32>
    %67 = arith.addf %41, %66 : vector<6x4xf32>
    %c24 = arith.constant 24 : index
    %68 = memref.load %arg1[%c24] : memref<162xf32, #tpu.memory_space<smem>>
    %69 = vector.broadcast %68 : f32 to vector<6x4xf32>
    %70 = arith.mulf %69, %59 : vector<6x4xf32>
    %71 = arith.addf %45, %70 : vector<6x4xf32>
    %c33 = arith.constant 33 : index
    %72 = memref.load %arg1[%c33] : memref<162xf32, #tpu.memory_space<smem>>
    %73 = vector.broadcast %72 : f32 to vector<6x4xf32>
    %74 = arith.mulf %73, %59 : vector<6x4xf32>
    %75 = arith.addf %49, %74 : vector<6x4xf32>
    %c42 = arith.constant 42 : index
    %76 = memref.load %arg1[%c42] : memref<162xf32, #tpu.memory_space<smem>>
    %77 = vector.broadcast %76 : f32 to vector<6x4xf32>
    %78 = arith.mulf %77, %59 : vector<6x4xf32>
    %79 = arith.addf %53, %78 : vector<6x4xf32>
    %c51 = arith.constant 51 : index
    %80 = memref.load %arg1[%c51] : memref<162xf32, #tpu.memory_space<smem>>
    %81 = vector.broadcast %80 : f32 to vector<6x4xf32>
    %82 = arith.mulf %81, %59 : vector<6x4xf32>
    %83 = arith.addf %57, %82 : vector<6x4xf32>
    %c0_10 = arith.constant 0 : index
    %c13_11 = arith.constant 13 : index
    %c13_12 = arith.constant 13 : index
    %84 = vector.load %arg0[%c0_10, %c13_11, %c13_12] : memref<3x32x32xf32, #tpu.memory_space<vmem>>, vector<1x6x4xf32>
    %85 = vector.shape_cast %84 : vector<1x6x4xf32> to vector<6x4xf32>
    %c5 = arith.constant 5 : index
    %86 = memref.load %arg1[%c5] : memref<162xf32, #tpu.memory_space<smem>>
    %87 = vector.broadcast %86 : f32 to vector<6x4xf32>
    %88 = arith.mulf %87, %85 : vector<6x4xf32>
    %89 = arith.addf %63, %88 : vector<6x4xf32>
    %c14_13 = arith.constant 14 : index
    %90 = memref.load %arg1[%c14_13] : memref<162xf32, #tpu.memory_space<smem>>
    %91 = vector.broadcast %90 : f32 to vector<6x4xf32>
    %92 = arith.mulf %91, %85 : vector<6x4xf32>
    %93 = arith.addf %67, %92 : vector<6x4xf32>
    %c23 = arith.constant 23 : index
    %94 = memref.load %arg1[%c23] : memref<162xf32, #tpu.memory_space<smem>>
    %95 = vector.broadcast %94 : f32 to vector<6x4xf32>
    %96 = arith.mulf %95, %85 : vector<6x4xf32>
    %97 = arith.addf %71, %96 : vector<6x4xf32>
    %c32 = arith.constant 32 : index
    %98 = memref.load %arg1[%c32] : memref<162xf32, #tpu.memory_space<smem>>
    %99 = vector.broadcast %98 : f32 to vector<6x4xf32>
    %100 = arith.mulf %99, %85 : vector<6x4xf32>
    %101 = arith.addf %75, %100 : vector<6x4xf32>
    %c41 = arith.constant 41 : index
    %102 = memref.load %arg1[%c41] : memref<162xf32, #tpu.memory_space<smem>>
    %103 = vector.broadcast %102 : f32 to vector<6x4xf32>
    %104 = arith.mulf %103, %85 : vector<6x4xf32>
    %105 = arith.addf %79, %104 : vector<6x4xf32>
    %c50 = arith.constant 50 : index
    %106 = memref.load %arg1[%c50] : memref<162xf32, #tpu.memory_space<smem>>
    %107 = vector.broadcast %106 : f32 to vector<6x4xf32>
    %108 = arith.mulf %107, %85 : vector<6x4xf32>
    %109 = arith.addf %83, %108 : vector<6x4xf32>
    %c0_14 = arith.constant 0 : index
    %c13_15 = arith.constant 13 : index
    %c14_16 = arith.constant 14 : index
    %110 = vector.load %arg0[%c0_14, %c13_15, %c14_16] : memref<3x32x32xf32, #tpu.memory_space<vmem>>, vector<1x6x4xf32>
    %111 = vector.shape_cast %110 : vector<1x6x4xf32> to vector<6x4xf32>
    %c4 = arith.constant 4 : index
    %112 = memref.load %arg1[%c4] : memref<162xf32, #tpu.memory_space<smem>>
    %113 = vector.broadcast %112 : f32 to vector<6x4xf32>
    %114 = arith.mulf %113, %111 : vector<6x4xf32>
    %115 = arith.addf %89, %114 : vector<6x4xf32>
    %c13_17 = arith.constant 13 : index
    %116 = memref.load %arg1[%c13_17] : memref<162xf32, #tpu.memory_space<smem>>
    %117 = vector.broadcast %116 : f32 to vector<6x4xf32>
    %118 = arith.mulf %117, %111 : vector<6x4xf32>
    %119 = arith.addf %93, %118 : vector<6x4xf32>
    %c22 = arith.constant 22 : index
    %120 = memref.load %arg1[%c22] : memref<162xf32, #tpu.memory_space<smem>>
    %121 = vector.broadcast %120 : f32 to vector<6x4xf32>
    %122 = arith.mulf %121, %111 : vector<6x4xf32>
    %123 = arith.addf %97, %122 : vector<6x4xf32>
    %c31 = arith.constant 31 : index
    %124 = memref.load %arg1[%c31] : memref<162xf32, #tpu.memory_space<smem>>
    %125 = vector.broadcast %124 : f32 to vector<6x4xf32>
    %126 = arith.mulf %125, %111 : vector<6x4xf32>
    %127 = arith.addf %101, %126 : vector<6x4xf32>
    %c40 = arith.constant 40 : index
    %128 = memref.load %arg1[%c40] : memref<162xf32, #tpu.memory_space<smem>>
    %129 = vector.broadcast %128 : f32 to vector<6x4xf32>
    %130 = arith.mulf %129, %111 : vector<6x4xf32>
    %131 = arith.addf %105, %130 : vector<6x4xf32>
    %c49 = arith.constant 49 : index
    %132 = memref.load %arg1[%c49] : memref<162xf32, #tpu.memory_space<smem>>
    %133 = vector.broadcast %132 : f32 to vector<6x4xf32>
    %134 = arith.mulf %133, %111 : vector<6x4xf32>
    %135 = arith.addf %109, %134 : vector<6x4xf32>
    %c0_18 = arith.constant 0 : index
    %c13_19 = arith.constant 13 : index
    %c15_20 = arith.constant 15 : index
    %136 = vector.load %arg0[%c0_18, %c13_19, %c15_20] : memref<3x32x32xf32, #tpu.memory_space<vmem>>, vector<1x6x4xf32>
    %137 = vector.shape_cast %136 : vector<1x6x4xf32> to vector<6x4xf32>
    %c3 = arith.constant 3 : index
    %138 = memref.load %arg1[%c3] : memref<162xf32, #tpu.memory_space<smem>>
    %139 = vector.broadcast %138 : f32 to vector<6x4xf32>
    %140 = arith.mulf %139, %137 : vector<6x4xf32>
    %141 = arith.addf %115, %140 : vector<6x4xf32>
    %c12_21 = arith.constant 12 : index
    %142 = memref.load %arg1[%c12_21] : memref<162xf32, #tpu.memory_space<smem>>
    %143 = vector.broadcast %142 : f32 to vector<6x4xf32>
    %144 = arith.mulf %143, %137 : vector<6x4xf32>
    %145 = arith.addf %119, %144 : vector<6x4xf32>
    %c21 = arith.constant 21 : index
    %146 = memref.load %arg1[%c21] : memref<162xf32, #tpu.memory_space<smem>>
    %147 = vector.broadcast %146 : f32 to vector<6x4xf32>
    %148 = arith.mulf %147, %137 : vector<6x4xf32>
    %149 = arith.addf %123, %148 : vector<6x4xf32>
    %c30 = arith.constant 30 : index
    %150 = memref.load %arg1[%c30] : memref<162xf32, #tpu.memory_space<smem>>
    %151 = vector.broadcast %150 : f32 to vector<6x4xf32>
    %152 = arith.mulf %151, %137 : vector<6x4xf32>
    %153 = arith.addf %127, %152 : vector<6x4xf32>
    %c39 = arith.constant 39 : index
    %154 = memref.load %arg1[%c39] : memref<162xf32, #tpu.memory_space<smem>>
    %155 = vector.broadcast %154 : f32 to vector<6x4xf32>
    %156 = arith.mulf %155, %137 : vector<6x4xf32>
    %157 = arith.addf %131, %156 : vector<6x4xf32>
    %c48 = arith.constant 48 : index
    %158 = memref.load %arg1[%c48] : memref<162xf32, #tpu.memory_space<smem>>
    %159 = vector.broadcast %158 : f32 to vector<6x4xf32>
    %160 = arith.mulf %159, %137 : vector<6x4xf32>
    %161 = arith.addf %135, %160 : vector<6x4xf32>
    %c0_22 = arith.constant 0 : index
    %c14_23 = arith.constant 14 : index
    %c13_24 = arith.constant 13 : index
    %162 = vector.load %arg0[%c0_22, %c14_23, %c13_24] : memref<3x32x32xf32, #tpu.memory_space<vmem>>, vector<1x6x4xf32>
    %163 = vector.shape_cast %162 : vector<1x6x4xf32> to vector<6x4xf32>
    %c2 = arith.constant 2 : index
    %164 = memref.load %arg1[%c2] : memref<162xf32, #tpu.memory_space<smem>>
    %165 = vector.broadcast %164 : f32 to vector<6x4xf32>
    %166 = arith.mulf %165, %163 : vector<6x4xf32>
    %167 = arith.addf %141, %166 : vector<6x4xf32>
    %c11 = arith.constant 11 : index
    %168 = memref.load %arg1[%c11] : memref<162xf32, #tpu.memory_space<smem>>
    %169 = vector.broadcast %168 : f32 to vector<6x4xf32>
    %170 = arith.mulf %169, %163 : vector<6x4xf32>
    %171 = arith.addf %145, %170 : vector<6x4xf32>
    %c20 = arith.constant 20 : index
    %172 = memref.load %arg1[%c20] : memref<162xf32, #tpu.memory_space<smem>>
    %173 = vector.broadcast %172 : f32 to vector<6x4xf32>
    %174 = arith.mulf %173, %163 : vector<6x4xf32>
    %175 = arith.addf %149, %174 : vector<6x4xf32>
    %c29 = arith.constant 29 : index
    %176 = memref.load %arg1[%c29] : memref<162xf32, #tpu.memory_space<smem>>
    %177 = vector.broadcast %176 : f32 to vector<6x4xf32>
    %178 = arith.mulf %177, %163 : vector<6x4xf32>
    %179 = arith.addf %153, %178 : vector<6x4xf32>
    %c38 = arith.constant 38 : index
    %180 = memref.load %arg1[%c38] : memref<162xf32, #tpu.memory_space<smem>>
    %181 = vector.broadcast %180 : f32 to vector<6x4xf32>
    %182 = arith.mulf %181, %163 : vector<6x4xf32>
    %183 = arith.addf %157, %182 : vector<6x4xf32>
    %c47 = arith.constant 47 : index
    %184 = memref.load %arg1[%c47] : memref<162xf32, #tpu.memory_space<smem>>
    %185 = vector.broadcast %184 : f32 to vector<6x4xf32>
    %186 = arith.mulf %185, %163 : vector<6x4xf32>
    %187 = arith.addf %161, %186 : vector<6x4xf32>
    %c0_25 = arith.constant 0 : index
    %c14_26 = arith.constant 14 : index
    %c14_27 = arith.constant 14 : index
    %188 = vector.load %arg0[%c0_25, %c14_26, %c14_27] : memref<3x32x32xf32, #tpu.memory_space<vmem>>, vector<1x6x4xf32>
    %189 = vector.shape_cast %188 : vector<1x6x4xf32> to vector<6x4xf32>
    %c1 = arith.constant 1 : index
    %190 = memref.load %arg1[%c1] : memref<162xf32, #tpu.memory_space<smem>>
    %191 = vector.broadcast %190 : f32 to vector<6x4xf32>
    %192 = arith.mulf %191, %189 : vector<6x4xf32>
    %193 = arith.addf %167, %192 : vector<6x4xf32>
    %c10 = arith.constant 10 : index
    %194 = memref.load %arg1[%c10] : memref<162xf32, #tpu.memory_space<smem>>
    %195 = vector.broadcast %194 : f32 to vector<6x4xf32>
    %196 = arith.mulf %195, %189 : vector<6x4xf32>
    %197 = arith.addf %171, %196 : vector<6x4xf32>
    %c19 = arith.constant 19 : index
    %198 = memref.load %arg1[%c19] : memref<162xf32, #tpu.memory_space<smem>>
    %199 = vector.broadcast %198 : f32 to vector<6x4xf32>
    %200 = arith.mulf %199, %189 : vector<6x4xf32>
    %201 = arith.addf %175, %200 : vector<6x4xf32>
    %c28 = arith.constant 28 : index
    %202 = memref.load %arg1[%c28] : memref<162xf32, #tpu.memory_space<smem>>
    %203 = vector.broadcast %202 : f32 to vector<6x4xf32>
    %204 = arith.mulf %203, %189 : vector<6x4xf32>
    %205 = arith.addf %179, %204 : vector<6x4xf32>
    %c37 = arith.constant 37 : index
    %206 = memref.load %arg1[%c37] : memref<162xf32, #tpu.memory_space<smem>>
    %207 = vector.broadcast %206 : f32 to vector<6x4xf32>
    %208 = arith.mulf %207, %189 : vector<6x4xf32>
    %209 = arith.addf %183, %208 : vector<6x4xf32>
    %c46 = arith.constant 46 : index
    %210 = memref.load %arg1[%c46] : memref<162xf32, #tpu.memory_space<smem>>
    %211 = vector.broadcast %210 : f32 to vector<6x4xf32>
    %212 = arith.mulf %211, %189 : vector<6x4xf32>
    %213 = arith.addf %187, %212 : vector<6x4xf32>
    %c0_28 = arith.constant 0 : index
    %c14_29 = arith.constant 14 : index
    %c15_30 = arith.constant 15 : index
    %214 = vector.load %arg0[%c0_28, %c14_29, %c15_30] : memref<3x32x32xf32, #tpu.memory_space<vmem>>, vector<1x6x4xf32>
    %215 = vector.shape_cast %214 : vector<1x6x4xf32> to vector<6x4xf32>
    %c0_31 = arith.constant 0 : index
    %216 = memref.load %arg1[%c0_31] : memref<162xf32, #tpu.memory_space<smem>>
    %217 = vector.broadcast %216 : f32 to vector<6x4xf32>
    %218 = arith.mulf %217, %215 : vector<6x4xf32>
    %219 = arith.addf %193, %218 : vector<6x4xf32>
    %c9 = arith.constant 9 : index
    %220 = memref.load %arg1[%c9] : memref<162xf32, #tpu.memory_space<smem>>
    %221 = vector.broadcast %220 : f32 to vector<6x4xf32>
    %222 = arith.mulf %221, %215 : vector<6x4xf32>
    %223 = arith.addf %197, %222 : vector<6x4xf32>
    %c18 = arith.constant 18 : index
    %224 = memref.load %arg1[%c18] : memref<162xf32, #tpu.memory_space<smem>>
    %225 = vector.broadcast %224 : f32 to vector<6x4xf32>
    %226 = arith.mulf %225, %215 : vector<6x4xf32>
    %227 = arith.addf %201, %226 : vector<6x4xf32>
    %c27 = arith.constant 27 : index
    %228 = memref.load %arg1[%c27] : memref<162xf32, #tpu.memory_space<smem>>
    %229 = vector.broadcast %228 : f32 to vector<6x4xf32>
    %230 = arith.mulf %229, %215 : vector<6x4xf32>
    %231 = arith.addf %205, %230 : vector<6x4xf32>
    %c36 = arith.constant 36 : index
    %232 = memref.load %arg1[%c36] : memref<162xf32, #tpu.memory_space<smem>>
    %233 = vector.broadcast %232 : f32 to vector<6x4xf32>
    %234 = arith.mulf %233, %215 : vector<6x4xf32>
    %235 = arith.addf %209, %234 : vector<6x4xf32>
    %c45 = arith.constant 45 : index
    %236 = memref.load %arg1[%c45] : memref<162xf32, #tpu.memory_space<smem>>
    %237 = vector.broadcast %236 : f32 to vector<6x4xf32>
    %238 = arith.mulf %237, %215 : vector<6x4xf32>
    %239 = arith.addf %213, %238 : vector<6x4xf32>
    %c1_32 = arith.constant 1 : index
    %c12_33 = arith.constant 12 : index
    %c13_34 = arith.constant 13 : index
    %240 = vector.load %arg0[%c1_32, %c12_33, %c13_34] : memref<3x32x32xf32, #tpu.memory_space<vmem>>, vector<1x6x4xf32>
    %241 = vector.shape_cast %240 : vector<1x6x4xf32> to vector<6x4xf32>
    %c62 = arith.constant 62 : index
    %242 = memref.load %arg1[%c62] : memref<162xf32, #tpu.memory_space<smem>>
    %243 = vector.broadcast %242 : f32 to vector<6x4xf32>
    %244 = arith.mulf %243, %241 : vector<6x4xf32>
    %245 = arith.addf %219, %244 : vector<6x4xf32>
    %c71 = arith.constant 71 : index
    %246 = memref.load %arg1[%c71] : memref<162xf32, #tpu.memory_space<smem>>
    %247 = vector.broadcast %246 : f32 to vector<6x4xf32>
    %248 = arith.mulf %247, %241 : vector<6x4xf32>
    %249 = arith.addf %223, %248 : vector<6x4xf32>
    %c80 = arith.constant 80 : index
    %250 = memref.load %arg1[%c80] : memref<162xf32, #tpu.memory_space<smem>>
    %251 = vector.broadcast %250 : f32 to vector<6x4xf32>
    %252 = arith.mulf %251, %241 : vector<6x4xf32>
    %253 = arith.addf %227, %252 : vector<6x4xf32>
    %c89 = arith.constant 89 : index
    %254 = memref.load %arg1[%c89] : memref<162xf32, #tpu.memory_space<smem>>
    %255 = vector.broadcast %254 : f32 to vector<6x4xf32>
    %256 = arith.mulf %255, %241 : vector<6x4xf32>
    %257 = arith.addf %231, %256 : vector<6x4xf32>
    %c98 = arith.constant 98 : index
    %258 = memref.load %arg1[%c98] : memref<162xf32, #tpu.memory_space<smem>>
    %259 = vector.broadcast %258 : f32 to vector<6x4xf32>
    %260 = arith.mulf %259, %241 : vector<6x4xf32>
    %261 = arith.addf %235, %260 : vector<6x4xf32>
    %c107 = arith.constant 107 : index
    %262 = memref.load %arg1[%c107] : memref<162xf32, #tpu.memory_space<smem>>
    %263 = vector.broadcast %262 : f32 to vector<6x4xf32>
    %264 = arith.mulf %263, %241 : vector<6x4xf32>
    %265 = arith.addf %239, %264 : vector<6x4xf32>
    %c1_35 = arith.constant 1 : index
    %c12_36 = arith.constant 12 : index
    %c14_37 = arith.constant 14 : index
    %266 = vector.load %arg0[%c1_35, %c12_36, %c14_37] : memref<3x32x32xf32, #tpu.memory_space<vmem>>, vector<1x6x4xf32>
    %267 = vector.shape_cast %266 : vector<1x6x4xf32> to vector<6x4xf32>
    %c61 = arith.constant 61 : index
    %268 = memref.load %arg1[%c61] : memref<162xf32, #tpu.memory_space<smem>>
    %269 = vector.broadcast %268 : f32 to vector<6x4xf32>
    %270 = arith.mulf %269, %267 : vector<6x4xf32>
    %271 = arith.addf %245, %270 : vector<6x4xf32>
    %c70 = arith.constant 70 : index
    %272 = memref.load %arg1[%c70] : memref<162xf32, #tpu.memory_space<smem>>
    %273 = vector.broadcast %272 : f32 to vector<6x4xf32>
    %274 = arith.mulf %273, %267 : vector<6x4xf32>
    %275 = arith.addf %249, %274 : vector<6x4xf32>
    %c79 = arith.constant 79 : index
    %276 = memref.load %arg1[%c79] : memref<162xf32, #tpu.memory_space<smem>>
    %277 = vector.broadcast %276 : f32 to vector<6x4xf32>
    %278 = arith.mulf %277, %267 : vector<6x4xf32>
    %279 = arith.addf %253, %278 : vector<6x4xf32>
    %c88 = arith.constant 88 : index
    %280 = memref.load %arg1[%c88] : memref<162xf32, #tpu.memory_space<smem>>
    %281 = vector.broadcast %280 : f32 to vector<6x4xf32>
    %282 = arith.mulf %281, %267 : vector<6x4xf32>
    %283 = arith.addf %257, %282 : vector<6x4xf32>
    %c97 = arith.constant 97 : index
    %284 = memref.load %arg1[%c97] : memref<162xf32, #tpu.memory_space<smem>>
    %285 = vector.broadcast %284 : f32 to vector<6x4xf32>
    %286 = arith.mulf %285, %267 : vector<6x4xf32>
    %287 = arith.addf %261, %286 : vector<6x4xf32>
    %c106 = arith.constant 106 : index
    %288 = memref.load %arg1[%c106] : memref<162xf32, #tpu.memory_space<smem>>
    %289 = vector.broadcast %288 : f32 to vector<6x4xf32>
    %290 = arith.mulf %289, %267 : vector<6x4xf32>
    %291 = arith.addf %265, %290 : vector<6x4xf32>
    %c1_38 = arith.constant 1 : index
    %c12_39 = arith.constant 12 : index
    %c15_40 = arith.constant 15 : index
    %292 = vector.load %arg0[%c1_38, %c12_39, %c15_40] : memref<3x32x32xf32, #tpu.memory_space<vmem>>, vector<1x6x4xf32>
    %293 = vector.shape_cast %292 : vector<1x6x4xf32> to vector<6x4xf32>
    %c60 = arith.constant 60 : index
    %294 = memref.load %arg1[%c60] : memref<162xf32, #tpu.memory_space<smem>>
    %295 = vector.broadcast %294 : f32 to vector<6x4xf32>
    %296 = arith.mulf %295, %293 : vector<6x4xf32>
    %297 = arith.addf %271, %296 : vector<6x4xf32>
    %c69 = arith.constant 69 : index
    %298 = memref.load %arg1[%c69] : memref<162xf32, #tpu.memory_space<smem>>
    %299 = vector.broadcast %298 : f32 to vector<6x4xf32>
    %300 = arith.mulf %299, %293 : vector<6x4xf32>
    %301 = arith.addf %275, %300 : vector<6x4xf32>
    %c78 = arith.constant 78 : index
    %302 = memref.load %arg1[%c78] : memref<162xf32, #tpu.memory_space<smem>>
    %303 = vector.broadcast %302 : f32 to vector<6x4xf32>
    %304 = arith.mulf %303, %293 : vector<6x4xf32>
    %305 = arith.addf %279, %304 : vector<6x4xf32>
    %c87 = arith.constant 87 : index
    %306 = memref.load %arg1[%c87] : memref<162xf32, #tpu.memory_space<smem>>
    %307 = vector.broadcast %306 : f32 to vector<6x4xf32>
    %308 = arith.mulf %307, %293 : vector<6x4xf32>
    %309 = arith.addf %283, %308 : vector<6x4xf32>
    %c96 = arith.constant 96 : index
    %310 = memref.load %arg1[%c96] : memref<162xf32, #tpu.memory_space<smem>>
    %311 = vector.broadcast %310 : f32 to vector<6x4xf32>
    %312 = arith.mulf %311, %293 : vector<6x4xf32>
    %313 = arith.addf %287, %312 : vector<6x4xf32>
    %c105 = arith.constant 105 : index
    %314 = memref.load %arg1[%c105] : memref<162xf32, #tpu.memory_space<smem>>
    %315 = vector.broadcast %314 : f32 to vector<6x4xf32>
    %316 = arith.mulf %315, %293 : vector<6x4xf32>
    %317 = arith.addf %291, %316 : vector<6x4xf32>
    %c1_41 = arith.constant 1 : index
    %c13_42 = arith.constant 13 : index
    %c13_43 = arith.constant 13 : index
    %318 = vector.load %arg0[%c1_41, %c13_42, %c13_43] : memref<3x32x32xf32, #tpu.memory_space<vmem>>, vector<1x6x4xf32>
    %319 = vector.shape_cast %318 : vector<1x6x4xf32> to vector<6x4xf32>
    %c59 = arith.constant 59 : index
    %320 = memref.load %arg1[%c59] : memref<162xf32, #tpu.memory_space<smem>>
    %321 = vector.broadcast %320 : f32 to vector<6x4xf32>
    %322 = arith.mulf %321, %319 : vector<6x4xf32>
    %323 = arith.addf %297, %322 : vector<6x4xf32>
    %c68 = arith.constant 68 : index
    %324 = memref.load %arg1[%c68] : memref<162xf32, #tpu.memory_space<smem>>
    %325 = vector.broadcast %324 : f32 to vector<6x4xf32>
    %326 = arith.mulf %325, %319 : vector<6x4xf32>
    %327 = arith.addf %301, %326 : vector<6x4xf32>
    %c77 = arith.constant 77 : index
    %328 = memref.load %arg1[%c77] : memref<162xf32, #tpu.memory_space<smem>>
    %329 = vector.broadcast %328 : f32 to vector<6x4xf32>
    %330 = arith.mulf %329, %319 : vector<6x4xf32>
    %331 = arith.addf %305, %330 : vector<6x4xf32>
    %c86 = arith.constant 86 : index
    %332 = memref.load %arg1[%c86] : memref<162xf32, #tpu.memory_space<smem>>
    %333 = vector.broadcast %332 : f32 to vector<6x4xf32>
    %334 = arith.mulf %333, %319 : vector<6x4xf32>
    %335 = arith.addf %309, %334 : vector<6x4xf32>
    %c95 = arith.constant 95 : index
    %336 = memref.load %arg1[%c95] : memref<162xf32, #tpu.memory_space<smem>>
    %337 = vector.broadcast %336 : f32 to vector<6x4xf32>
    %338 = arith.mulf %337, %319 : vector<6x4xf32>
    %339 = arith.addf %313, %338 : vector<6x4xf32>
    %c104 = arith.constant 104 : index
    %340 = memref.load %arg1[%c104] : memref<162xf32, #tpu.memory_space<smem>>
    %341 = vector.broadcast %340 : f32 to vector<6x4xf32>
    %342 = arith.mulf %341, %319 : vector<6x4xf32>
    %343 = arith.addf %317, %342 : vector<6x4xf32>
    %c1_44 = arith.constant 1 : index
    %c13_45 = arith.constant 13 : index
    %c14_46 = arith.constant 14 : index
    %344 = vector.load %arg0[%c1_44, %c13_45, %c14_46] : memref<3x32x32xf32, #tpu.memory_space<vmem>>, vector<1x6x4xf32>
    %345 = vector.shape_cast %344 : vector<1x6x4xf32> to vector<6x4xf32>
    %c58 = arith.constant 58 : index
    %346 = memref.load %arg1[%c58] : memref<162xf32, #tpu.memory_space<smem>>
    %347 = vector.broadcast %346 : f32 to vector<6x4xf32>
    %348 = arith.mulf %347, %345 : vector<6x4xf32>
    %349 = arith.addf %323, %348 : vector<6x4xf32>
    %c67 = arith.constant 67 : index
    %350 = memref.load %arg1[%c67] : memref<162xf32, #tpu.memory_space<smem>>
    %351 = vector.broadcast %350 : f32 to vector<6x4xf32>
    %352 = arith.mulf %351, %345 : vector<6x4xf32>
    %353 = arith.addf %327, %352 : vector<6x4xf32>
    %c76 = arith.constant 76 : index
    %354 = memref.load %arg1[%c76] : memref<162xf32, #tpu.memory_space<smem>>
    %355 = vector.broadcast %354 : f32 to vector<6x4xf32>
    %356 = arith.mulf %355, %345 : vector<6x4xf32>
    %357 = arith.addf %331, %356 : vector<6x4xf32>
    %c85 = arith.constant 85 : index
    %358 = memref.load %arg1[%c85] : memref<162xf32, #tpu.memory_space<smem>>
    %359 = vector.broadcast %358 : f32 to vector<6x4xf32>
    %360 = arith.mulf %359, %345 : vector<6x4xf32>
    %361 = arith.addf %335, %360 : vector<6x4xf32>
    %c94 = arith.constant 94 : index
    %362 = memref.load %arg1[%c94] : memref<162xf32, #tpu.memory_space<smem>>
    %363 = vector.broadcast %362 : f32 to vector<6x4xf32>
    %364 = arith.mulf %363, %345 : vector<6x4xf32>
    %365 = arith.addf %339, %364 : vector<6x4xf32>
    %c103 = arith.constant 103 : index
    %366 = memref.load %arg1[%c103] : memref<162xf32, #tpu.memory_space<smem>>
    %367 = vector.broadcast %366 : f32 to vector<6x4xf32>
    %368 = arith.mulf %367, %345 : vector<6x4xf32>
    %369 = arith.addf %343, %368 : vector<6x4xf32>
    %c1_47 = arith.constant 1 : index
    %c13_48 = arith.constant 13 : index
    %c15_49 = arith.constant 15 : index
    %370 = vector.load %arg0[%c1_47, %c13_48, %c15_49] : memref<3x32x32xf32, #tpu.memory_space<vmem>>, vector<1x6x4xf32>
    %371 = vector.shape_cast %370 : vector<1x6x4xf32> to vector<6x4xf32>
    %c57 = arith.constant 57 : index
    %372 = memref.load %arg1[%c57] : memref<162xf32, #tpu.memory_space<smem>>
    %373 = vector.broadcast %372 : f32 to vector<6x4xf32>
    %374 = arith.mulf %373, %371 : vector<6x4xf32>
    %375 = arith.addf %349, %374 : vector<6x4xf32>
    %c66 = arith.constant 66 : index
    %376 = memref.load %arg1[%c66] : memref<162xf32, #tpu.memory_space<smem>>
    %377 = vector.broadcast %376 : f32 to vector<6x4xf32>
    %378 = arith.mulf %377, %371 : vector<6x4xf32>
    %379 = arith.addf %353, %378 : vector<6x4xf32>
    %c75 = arith.constant 75 : index
    %380 = memref.load %arg1[%c75] : memref<162xf32, #tpu.memory_space<smem>>
    %381 = vector.broadcast %380 : f32 to vector<6x4xf32>
    %382 = arith.mulf %381, %371 : vector<6x4xf32>
    %383 = arith.addf %357, %382 : vector<6x4xf32>
    %c84 = arith.constant 84 : index
    %384 = memref.load %arg1[%c84] : memref<162xf32, #tpu.memory_space<smem>>
    %385 = vector.broadcast %384 : f32 to vector<6x4xf32>
    %386 = arith.mulf %385, %371 : vector<6x4xf32>
    %387 = arith.addf %361, %386 : vector<6x4xf32>
    %c93 = arith.constant 93 : index
    %388 = memref.load %arg1[%c93] : memref<162xf32, #tpu.memory_space<smem>>
    %389 = vector.broadcast %388 : f32 to vector<6x4xf32>
    %390 = arith.mulf %389, %371 : vector<6x4xf32>
    %391 = arith.addf %365, %390 : vector<6x4xf32>
    %c102 = arith.constant 102 : index
    %392 = memref.load %arg1[%c102] : memref<162xf32, #tpu.memory_space<smem>>
    %393 = vector.broadcast %392 : f32 to vector<6x4xf32>
    %394 = arith.mulf %393, %371 : vector<6x4xf32>
    %395 = arith.addf %369, %394 : vector<6x4xf32>
    %c1_50 = arith.constant 1 : index
    %c14_51 = arith.constant 14 : index
    %c13_52 = arith.constant 13 : index
    %396 = vector.load %arg0[%c1_50, %c14_51, %c13_52] : memref<3x32x32xf32, #tpu.memory_space<vmem>>, vector<1x6x4xf32>
    %397 = vector.shape_cast %396 : vector<1x6x4xf32> to vector<6x4xf32>
    %c56 = arith.constant 56 : index
    %398 = memref.load %arg1[%c56] : memref<162xf32, #tpu.memory_space<smem>>
    %399 = vector.broadcast %398 : f32 to vector<6x4xf32>
    %400 = arith.mulf %399, %397 : vector<6x4xf32>
    %401 = arith.addf %375, %400 : vector<6x4xf32>
    %c65 = arith.constant 65 : index
    %402 = memref.load %arg1[%c65] : memref<162xf32, #tpu.memory_space<smem>>
    %403 = vector.broadcast %402 : f32 to vector<6x4xf32>
    %404 = arith.mulf %403, %397 : vector<6x4xf32>
    %405 = arith.addf %379, %404 : vector<6x4xf32>
    %c74 = arith.constant 74 : index
    %406 = memref.load %arg1[%c74] : memref<162xf32, #tpu.memory_space<smem>>
    %407 = vector.broadcast %406 : f32 to vector<6x4xf32>
    %408 = arith.mulf %407, %397 : vector<6x4xf32>
    %409 = arith.addf %383, %408 : vector<6x4xf32>
    %c83 = arith.constant 83 : index
    %410 = memref.load %arg1[%c83] : memref<162xf32, #tpu.memory_space<smem>>
    %411 = vector.broadcast %410 : f32 to vector<6x4xf32>
    %412 = arith.mulf %411, %397 : vector<6x4xf32>
    %413 = arith.addf %387, %412 : vector<6x4xf32>
    %c92 = arith.constant 92 : index
    %414 = memref.load %arg1[%c92] : memref<162xf32, #tpu.memory_space<smem>>
    %415 = vector.broadcast %414 : f32 to vector<6x4xf32>
    %416 = arith.mulf %415, %397 : vector<6x4xf32>
    %417 = arith.addf %391, %416 : vector<6x4xf32>
    %c101 = arith.constant 101 : index
    %418 = memref.load %arg1[%c101] : memref<162xf32, #tpu.memory_space<smem>>
    %419 = vector.broadcast %418 : f32 to vector<6x4xf32>
    %420 = arith.mulf %419, %397 : vector<6x4xf32>
    %421 = arith.addf %395, %420 : vector<6x4xf32>
    %c1_53 = arith.constant 1 : index
    %c14_54 = arith.constant 14 : index
    %c14_55 = arith.constant 14 : index
    %422 = vector.load %arg0[%c1_53, %c14_54, %c14_55] : memref<3x32x32xf32, #tpu.memory_space<vmem>>, vector<1x6x4xf32>
    %423 = vector.shape_cast %422 : vector<1x6x4xf32> to vector<6x4xf32>
    %c55 = arith.constant 55 : index
    %424 = memref.load %arg1[%c55] : memref<162xf32, #tpu.memory_space<smem>>
    %425 = vector.broadcast %424 : f32 to vector<6x4xf32>
    %426 = arith.mulf %425, %423 : vector<6x4xf32>
    %427 = arith.addf %401, %426 : vector<6x4xf32>
    %c64 = arith.constant 64 : index
    %428 = memref.load %arg1[%c64] : memref<162xf32, #tpu.memory_space<smem>>
    %429 = vector.broadcast %428 : f32 to vector<6x4xf32>
    %430 = arith.mulf %429, %423 : vector<6x4xf32>
    %431 = arith.addf %405, %430 : vector<6x4xf32>
    %c73 = arith.constant 73 : index
    %432 = memref.load %arg1[%c73] : memref<162xf32, #tpu.memory_space<smem>>
    %433 = vector.broadcast %432 : f32 to vector<6x4xf32>
    %434 = arith.mulf %433, %423 : vector<6x4xf32>
    %435 = arith.addf %409, %434 : vector<6x4xf32>
    %c82 = arith.constant 82 : index
    %436 = memref.load %arg1[%c82] : memref<162xf32, #tpu.memory_space<smem>>
    %437 = vector.broadcast %436 : f32 to vector<6x4xf32>
    %438 = arith.mulf %437, %423 : vector<6x4xf32>
    %439 = arith.addf %413, %438 : vector<6x4xf32>
    %c91 = arith.constant 91 : index
    %440 = memref.load %arg1[%c91] : memref<162xf32, #tpu.memory_space<smem>>
    %441 = vector.broadcast %440 : f32 to vector<6x4xf32>
    %442 = arith.mulf %441, %423 : vector<6x4xf32>
    %443 = arith.addf %417, %442 : vector<6x4xf32>
    %c100 = arith.constant 100 : index
    %444 = memref.load %arg1[%c100] : memref<162xf32, #tpu.memory_space<smem>>
    %445 = vector.broadcast %444 : f32 to vector<6x4xf32>
    %446 = arith.mulf %445, %423 : vector<6x4xf32>
    %447 = arith.addf %421, %446 : vector<6x4xf32>
    %c1_56 = arith.constant 1 : index
    %c14_57 = arith.constant 14 : index
    %c15_58 = arith.constant 15 : index
    %448 = vector.load %arg0[%c1_56, %c14_57, %c15_58] : memref<3x32x32xf32, #tpu.memory_space<vmem>>, vector<1x6x4xf32>
    %449 = vector.shape_cast %448 : vector<1x6x4xf32> to vector<6x4xf32>
    %c54 = arith.constant 54 : index
    %450 = memref.load %arg1[%c54] : memref<162xf32, #tpu.memory_space<smem>>
    %451 = vector.broadcast %450 : f32 to vector<6x4xf32>
    %452 = arith.mulf %451, %449 : vector<6x4xf32>
    %453 = arith.addf %427, %452 : vector<6x4xf32>
    %c63 = arith.constant 63 : index
    %454 = memref.load %arg1[%c63] : memref<162xf32, #tpu.memory_space<smem>>
    %455 = vector.broadcast %454 : f32 to vector<6x4xf32>
    %456 = arith.mulf %455, %449 : vector<6x4xf32>
    %457 = arith.addf %431, %456 : vector<6x4xf32>
    %c72 = arith.constant 72 : index
    %458 = memref.load %arg1[%c72] : memref<162xf32, #tpu.memory_space<smem>>
    %459 = vector.broadcast %458 : f32 to vector<6x4xf32>
    %460 = arith.mulf %459, %449 : vector<6x4xf32>
    %461 = arith.addf %435, %460 : vector<6x4xf32>
    %c81 = arith.constant 81 : index
    %462 = memref.load %arg1[%c81] : memref<162xf32, #tpu.memory_space<smem>>
    %463 = vector.broadcast %462 : f32 to vector<6x4xf32>
    %464 = arith.mulf %463, %449 : vector<6x4xf32>
    %465 = arith.addf %439, %464 : vector<6x4xf32>
    %c90 = arith.constant 90 : index
    %466 = memref.load %arg1[%c90] : memref<162xf32, #tpu.memory_space<smem>>
    %467 = vector.broadcast %466 : f32 to vector<6x4xf32>
    %468 = arith.mulf %467, %449 : vector<6x4xf32>
    %469 = arith.addf %443, %468 : vector<6x4xf32>
    %c99 = arith.constant 99 : index
    %470 = memref.load %arg1[%c99] : memref<162xf32, #tpu.memory_space<smem>>
    %471 = vector.broadcast %470 : f32 to vector<6x4xf32>
    %472 = arith.mulf %471, %449 : vector<6x4xf32>
    %473 = arith.addf %447, %472 : vector<6x4xf32>
    %c2_59 = arith.constant 2 : index
    %c12_60 = arith.constant 12 : index
    %c13_61 = arith.constant 13 : index
    %474 = vector.load %arg0[%c2_59, %c12_60, %c13_61] : memref<3x32x32xf32, #tpu.memory_space<vmem>>, vector<1x6x4xf32>
    %475 = vector.shape_cast %474 : vector<1x6x4xf32> to vector<6x4xf32>
    %c116 = arith.constant 116 : index
    %476 = memref.load %arg1[%c116] : memref<162xf32, #tpu.memory_space<smem>>
    %477 = vector.broadcast %476 : f32 to vector<6x4xf32>
    %478 = arith.mulf %477, %475 : vector<6x4xf32>
    %479 = arith.addf %453, %478 : vector<6x4xf32>
    %c125 = arith.constant 125 : index
    %480 = memref.load %arg1[%c125] : memref<162xf32, #tpu.memory_space<smem>>
    %481 = vector.broadcast %480 : f32 to vector<6x4xf32>
    %482 = arith.mulf %481, %475 : vector<6x4xf32>
    %483 = arith.addf %457, %482 : vector<6x4xf32>
    %c134 = arith.constant 134 : index
    %484 = memref.load %arg1[%c134] : memref<162xf32, #tpu.memory_space<smem>>
    %485 = vector.broadcast %484 : f32 to vector<6x4xf32>
    %486 = arith.mulf %485, %475 : vector<6x4xf32>
    %487 = arith.addf %461, %486 : vector<6x4xf32>
    %c143 = arith.constant 143 : index
    %488 = memref.load %arg1[%c143] : memref<162xf32, #tpu.memory_space<smem>>
    %489 = vector.broadcast %488 : f32 to vector<6x4xf32>
    %490 = arith.mulf %489, %475 : vector<6x4xf32>
    %491 = arith.addf %465, %490 : vector<6x4xf32>
    %c152 = arith.constant 152 : index
    %492 = memref.load %arg1[%c152] : memref<162xf32, #tpu.memory_space<smem>>
    %493 = vector.broadcast %492 : f32 to vector<6x4xf32>
    %494 = arith.mulf %493, %475 : vector<6x4xf32>
    %495 = arith.addf %469, %494 : vector<6x4xf32>
    %c161 = arith.constant 161 : index
    %496 = memref.load %arg1[%c161] : memref<162xf32, #tpu.memory_space<smem>>
    %497 = vector.broadcast %496 : f32 to vector<6x4xf32>
    %498 = arith.mulf %497, %475 : vector<6x4xf32>
    %499 = arith.addf %473, %498 : vector<6x4xf32>
    %c2_62 = arith.constant 2 : index
    %c12_63 = arith.constant 12 : index
    %c14_64 = arith.constant 14 : index
    %500 = vector.load %arg0[%c2_62, %c12_63, %c14_64] : memref<3x32x32xf32, #tpu.memory_space<vmem>>, vector<1x6x4xf32>
    %501 = vector.shape_cast %500 : vector<1x6x4xf32> to vector<6x4xf32>
    %c115 = arith.constant 115 : index
    %502 = memref.load %arg1[%c115] : memref<162xf32, #tpu.memory_space<smem>>
    %503 = vector.broadcast %502 : f32 to vector<6x4xf32>
    %504 = arith.mulf %503, %501 : vector<6x4xf32>
    %505 = arith.addf %479, %504 : vector<6x4xf32>
    %c124 = arith.constant 124 : index
    %506 = memref.load %arg1[%c124] : memref<162xf32, #tpu.memory_space<smem>>
    %507 = vector.broadcast %506 : f32 to vector<6x4xf32>
    %508 = arith.mulf %507, %501 : vector<6x4xf32>
    %509 = arith.addf %483, %508 : vector<6x4xf32>
    %c133 = arith.constant 133 : index
    %510 = memref.load %arg1[%c133] : memref<162xf32, #tpu.memory_space<smem>>
    %511 = vector.broadcast %510 : f32 to vector<6x4xf32>
    %512 = arith.mulf %511, %501 : vector<6x4xf32>
    %513 = arith.addf %487, %512 : vector<6x4xf32>
    %c142 = arith.constant 142 : index
    %514 = memref.load %arg1[%c142] : memref<162xf32, #tpu.memory_space<smem>>
    %515 = vector.broadcast %514 : f32 to vector<6x4xf32>
    %516 = arith.mulf %515, %501 : vector<6x4xf32>
    %517 = arith.addf %491, %516 : vector<6x4xf32>
    %c151 = arith.constant 151 : index
    %518 = memref.load %arg1[%c151] : memref<162xf32, #tpu.memory_space<smem>>
    %519 = vector.broadcast %518 : f32 to vector<6x4xf32>
    %520 = arith.mulf %519, %501 : vector<6x4xf32>
    %521 = arith.addf %495, %520 : vector<6x4xf32>
    %c160 = arith.constant 160 : index
    %522 = memref.load %arg1[%c160] : memref<162xf32, #tpu.memory_space<smem>>
    %523 = vector.broadcast %522 : f32 to vector<6x4xf32>
    %524 = arith.mulf %523, %501 : vector<6x4xf32>
    %525 = arith.addf %499, %524 : vector<6x4xf32>
    %c2_65 = arith.constant 2 : index
    %c12_66 = arith.constant 12 : index
    %c15_67 = arith.constant 15 : index
    %526 = vector.load %arg0[%c2_65, %c12_66, %c15_67] : memref<3x32x32xf32, #tpu.memory_space<vmem>>, vector<1x6x4xf32>
    %527 = vector.shape_cast %526 : vector<1x6x4xf32> to vector<6x4xf32>
    %c114 = arith.constant 114 : index
    %528 = memref.load %arg1[%c114] : memref<162xf32, #tpu.memory_space<smem>>
    %529 = vector.broadcast %528 : f32 to vector<6x4xf32>
    %530 = arith.mulf %529, %527 : vector<6x4xf32>
    %531 = arith.addf %505, %530 : vector<6x4xf32>
    %c123 = arith.constant 123 : index
    %532 = memref.load %arg1[%c123] : memref<162xf32, #tpu.memory_space<smem>>
    %533 = vector.broadcast %532 : f32 to vector<6x4xf32>
    %534 = arith.mulf %533, %527 : vector<6x4xf32>
    %535 = arith.addf %509, %534 : vector<6x4xf32>
    %c132 = arith.constant 132 : index
    %536 = memref.load %arg1[%c132] : memref<162xf32, #tpu.memory_space<smem>>
    %537 = vector.broadcast %536 : f32 to vector<6x4xf32>
    %538 = arith.mulf %537, %527 : vector<6x4xf32>
    %539 = arith.addf %513, %538 : vector<6x4xf32>
    %c141 = arith.constant 141 : index
    %540 = memref.load %arg1[%c141] : memref<162xf32, #tpu.memory_space<smem>>
    %541 = vector.broadcast %540 : f32 to vector<6x4xf32>
    %542 = arith.mulf %541, %527 : vector<6x4xf32>
    %543 = arith.addf %517, %542 : vector<6x4xf32>
    %c150 = arith.constant 150 : index
    %544 = memref.load %arg1[%c150] : memref<162xf32, #tpu.memory_space<smem>>
    %545 = vector.broadcast %544 : f32 to vector<6x4xf32>
    %546 = arith.mulf %545, %527 : vector<6x4xf32>
    %547 = arith.addf %521, %546 : vector<6x4xf32>
    %c159 = arith.constant 159 : index
    %548 = memref.load %arg1[%c159] : memref<162xf32, #tpu.memory_space<smem>>
    %549 = vector.broadcast %548 : f32 to vector<6x4xf32>
    %550 = arith.mulf %549, %527 : vector<6x4xf32>
    %551 = arith.addf %525, %550 : vector<6x4xf32>
    %c2_68 = arith.constant 2 : index
    %c13_69 = arith.constant 13 : index
    %c13_70 = arith.constant 13 : index
    %552 = vector.load %arg0[%c2_68, %c13_69, %c13_70] : memref<3x32x32xf32, #tpu.memory_space<vmem>>, vector<1x6x4xf32>
    %553 = vector.shape_cast %552 : vector<1x6x4xf32> to vector<6x4xf32>
    %c113 = arith.constant 113 : index
    %554 = memref.load %arg1[%c113] : memref<162xf32, #tpu.memory_space<smem>>
    %555 = vector.broadcast %554 : f32 to vector<6x4xf32>
    %556 = arith.mulf %555, %553 : vector<6x4xf32>
    %557 = arith.addf %531, %556 : vector<6x4xf32>
    %c122 = arith.constant 122 : index
    %558 = memref.load %arg1[%c122] : memref<162xf32, #tpu.memory_space<smem>>
    %559 = vector.broadcast %558 : f32 to vector<6x4xf32>
    %560 = arith.mulf %559, %553 : vector<6x4xf32>
    %561 = arith.addf %535, %560 : vector<6x4xf32>
    %c131 = arith.constant 131 : index
    %562 = memref.load %arg1[%c131] : memref<162xf32, #tpu.memory_space<smem>>
    %563 = vector.broadcast %562 : f32 to vector<6x4xf32>
    %564 = arith.mulf %563, %553 : vector<6x4xf32>
    %565 = arith.addf %539, %564 : vector<6x4xf32>
    %c140 = arith.constant 140 : index
    %566 = memref.load %arg1[%c140] : memref<162xf32, #tpu.memory_space<smem>>
    %567 = vector.broadcast %566 : f32 to vector<6x4xf32>
    %568 = arith.mulf %567, %553 : vector<6x4xf32>
    %569 = arith.addf %543, %568 : vector<6x4xf32>
    %c149 = arith.constant 149 : index
    %570 = memref.load %arg1[%c149] : memref<162xf32, #tpu.memory_space<smem>>
    %571 = vector.broadcast %570 : f32 to vector<6x4xf32>
    %572 = arith.mulf %571, %553 : vector<6x4xf32>
    %573 = arith.addf %547, %572 : vector<6x4xf32>
    %c158 = arith.constant 158 : index
    %574 = memref.load %arg1[%c158] : memref<162xf32, #tpu.memory_space<smem>>
    %575 = vector.broadcast %574 : f32 to vector<6x4xf32>
    %576 = arith.mulf %575, %553 : vector<6x4xf32>
    %577 = arith.addf %551, %576 : vector<6x4xf32>
    %c2_71 = arith.constant 2 : index
    %c13_72 = arith.constant 13 : index
    %c14_73 = arith.constant 14 : index
    %578 = vector.load %arg0[%c2_71, %c13_72, %c14_73] : memref<3x32x32xf32, #tpu.memory_space<vmem>>, vector<1x6x4xf32>
    %579 = vector.shape_cast %578 : vector<1x6x4xf32> to vector<6x4xf32>
    %c112 = arith.constant 112 : index
    %580 = memref.load %arg1[%c112] : memref<162xf32, #tpu.memory_space<smem>>
    %581 = vector.broadcast %580 : f32 to vector<6x4xf32>
    %582 = arith.mulf %581, %579 : vector<6x4xf32>
    %583 = arith.addf %557, %582 : vector<6x4xf32>
    %c121 = arith.constant 121 : index
    %584 = memref.load %arg1[%c121] : memref<162xf32, #tpu.memory_space<smem>>
    %585 = vector.broadcast %584 : f32 to vector<6x4xf32>
    %586 = arith.mulf %585, %579 : vector<6x4xf32>
    %587 = arith.addf %561, %586 : vector<6x4xf32>
    %c130 = arith.constant 130 : index
    %588 = memref.load %arg1[%c130] : memref<162xf32, #tpu.memory_space<smem>>
    %589 = vector.broadcast %588 : f32 to vector<6x4xf32>
    %590 = arith.mulf %589, %579 : vector<6x4xf32>
    %591 = arith.addf %565, %590 : vector<6x4xf32>
    %c139 = arith.constant 139 : index
    %592 = memref.load %arg1[%c139] : memref<162xf32, #tpu.memory_space<smem>>
    %593 = vector.broadcast %592 : f32 to vector<6x4xf32>
    %594 = arith.mulf %593, %579 : vector<6x4xf32>
    %595 = arith.addf %569, %594 : vector<6x4xf32>
    %c148 = arith.constant 148 : index
    %596 = memref.load %arg1[%c148] : memref<162xf32, #tpu.memory_space<smem>>
    %597 = vector.broadcast %596 : f32 to vector<6x4xf32>
    %598 = arith.mulf %597, %579 : vector<6x4xf32>
    %599 = arith.addf %573, %598 : vector<6x4xf32>
    %c157 = arith.constant 157 : index
    %600 = memref.load %arg1[%c157] : memref<162xf32, #tpu.memory_space<smem>>
    %601 = vector.broadcast %600 : f32 to vector<6x4xf32>
    %602 = arith.mulf %601, %579 : vector<6x4xf32>
    %603 = arith.addf %577, %602 : vector<6x4xf32>
    %c2_74 = arith.constant 2 : index
    %c13_75 = arith.constant 13 : index
    %c15_76 = arith.constant 15 : index
    %604 = vector.load %arg0[%c2_74, %c13_75, %c15_76] : memref<3x32x32xf32, #tpu.memory_space<vmem>>, vector<1x6x4xf32>
    %605 = vector.shape_cast %604 : vector<1x6x4xf32> to vector<6x4xf32>
    %c111 = arith.constant 111 : index
    %606 = memref.load %arg1[%c111] : memref<162xf32, #tpu.memory_space<smem>>
    %607 = vector.broadcast %606 : f32 to vector<6x4xf32>
    %608 = arith.mulf %607, %605 : vector<6x4xf32>
    %609 = arith.addf %583, %608 : vector<6x4xf32>
    %c120 = arith.constant 120 : index
    %610 = memref.load %arg1[%c120] : memref<162xf32, #tpu.memory_space<smem>>
    %611 = vector.broadcast %610 : f32 to vector<6x4xf32>
    %612 = arith.mulf %611, %605 : vector<6x4xf32>
    %613 = arith.addf %587, %612 : vector<6x4xf32>
    %c129 = arith.constant 129 : index
    %614 = memref.load %arg1[%c129] : memref<162xf32, #tpu.memory_space<smem>>
    %615 = vector.broadcast %614 : f32 to vector<6x4xf32>
    %616 = arith.mulf %615, %605 : vector<6x4xf32>
    %617 = arith.addf %591, %616 : vector<6x4xf32>
    %c138 = arith.constant 138 : index
    %618 = memref.load %arg1[%c138] : memref<162xf32, #tpu.memory_space<smem>>
    %619 = vector.broadcast %618 : f32 to vector<6x4xf32>
    %620 = arith.mulf %619, %605 : vector<6x4xf32>
    %621 = arith.addf %595, %620 : vector<6x4xf32>
    %c147 = arith.constant 147 : index
    %622 = memref.load %arg1[%c147] : memref<162xf32, #tpu.memory_space<smem>>
    %623 = vector.broadcast %622 : f32 to vector<6x4xf32>
    %624 = arith.mulf %623, %605 : vector<6x4xf32>
    %625 = arith.addf %599, %624 : vector<6x4xf32>
    %c156 = arith.constant 156 : index
    %626 = memref.load %arg1[%c156] : memref<162xf32, #tpu.memory_space<smem>>
    %627 = vector.broadcast %626 : f32 to vector<6x4xf32>
    %628 = arith.mulf %627, %605 : vector<6x4xf32>
    %629 = arith.addf %603, %628 : vector<6x4xf32>
    %c2_77 = arith.constant 2 : index
    %c14_78 = arith.constant 14 : index
    %c13_79 = arith.constant 13 : index
    %630 = vector.load %arg0[%c2_77, %c14_78, %c13_79] : memref<3x32x32xf32, #tpu.memory_space<vmem>>, vector<1x6x4xf32>
    %631 = vector.shape_cast %630 : vector<1x6x4xf32> to vector<6x4xf32>
    %c110 = arith.constant 110 : index
    %632 = memref.load %arg1[%c110] : memref<162xf32, #tpu.memory_space<smem>>
    %633 = vector.broadcast %632 : f32 to vector<6x4xf32>
    %634 = arith.mulf %633, %631 : vector<6x4xf32>
    %635 = arith.addf %609, %634 : vector<6x4xf32>
    %c119 = arith.constant 119 : index
    %636 = memref.load %arg1[%c119] : memref<162xf32, #tpu.memory_space<smem>>
    %637 = vector.broadcast %636 : f32 to vector<6x4xf32>
    %638 = arith.mulf %637, %631 : vector<6x4xf32>
    %639 = arith.addf %613, %638 : vector<6x4xf32>
    %c128 = arith.constant 128 : index
    %640 = memref.load %arg1[%c128] : memref<162xf32, #tpu.memory_space<smem>>
    %641 = vector.broadcast %640 : f32 to vector<6x4xf32>
    %642 = arith.mulf %641, %631 : vector<6x4xf32>
    %643 = arith.addf %617, %642 : vector<6x4xf32>
    %c137 = arith.constant 137 : index
    %644 = memref.load %arg1[%c137] : memref<162xf32, #tpu.memory_space<smem>>
    %645 = vector.broadcast %644 : f32 to vector<6x4xf32>
    %646 = arith.mulf %645, %631 : vector<6x4xf32>
    %647 = arith.addf %621, %646 : vector<6x4xf32>
    %c146 = arith.constant 146 : index
    %648 = memref.load %arg1[%c146] : memref<162xf32, #tpu.memory_space<smem>>
    %649 = vector.broadcast %648 : f32 to vector<6x4xf32>
    %650 = arith.mulf %649, %631 : vector<6x4xf32>
    %651 = arith.addf %625, %650 : vector<6x4xf32>
    %c155 = arith.constant 155 : index
    %652 = memref.load %arg1[%c155] : memref<162xf32, #tpu.memory_space<smem>>
    %653 = vector.broadcast %652 : f32 to vector<6x4xf32>
    %654 = arith.mulf %653, %631 : vector<6x4xf32>
    %655 = arith.addf %629, %654 : vector<6x4xf32>
    %c2_80 = arith.constant 2 : index
    %c14_81 = arith.constant 14 : index
    %c14_82 = arith.constant 14 : index
    %656 = vector.load %arg0[%c2_80, %c14_81, %c14_82] : memref<3x32x32xf32, #tpu.memory_space<vmem>>, vector<1x6x4xf32>
    %657 = vector.shape_cast %656 : vector<1x6x4xf32> to vector<6x4xf32>
    %c109 = arith.constant 109 : index
    %658 = memref.load %arg1[%c109] : memref<162xf32, #tpu.memory_space<smem>>
    %659 = vector.broadcast %658 : f32 to vector<6x4xf32>
    %660 = arith.mulf %659, %657 : vector<6x4xf32>
    %661 = arith.addf %635, %660 : vector<6x4xf32>
    %c118 = arith.constant 118 : index
    %662 = memref.load %arg1[%c118] : memref<162xf32, #tpu.memory_space<smem>>
    %663 = vector.broadcast %662 : f32 to vector<6x4xf32>
    %664 = arith.mulf %663, %657 : vector<6x4xf32>
    %665 = arith.addf %639, %664 : vector<6x4xf32>
    %c127 = arith.constant 127 : index
    %666 = memref.load %arg1[%c127] : memref<162xf32, #tpu.memory_space<smem>>
    %667 = vector.broadcast %666 : f32 to vector<6x4xf32>
    %668 = arith.mulf %667, %657 : vector<6x4xf32>
    %669 = arith.addf %643, %668 : vector<6x4xf32>
    %c136 = arith.constant 136 : index
    %670 = memref.load %arg1[%c136] : memref<162xf32, #tpu.memory_space<smem>>
    %671 = vector.broadcast %670 : f32 to vector<6x4xf32>
    %672 = arith.mulf %671, %657 : vector<6x4xf32>
    %673 = arith.addf %647, %672 : vector<6x4xf32>
    %c145 = arith.constant 145 : index
    %674 = memref.load %arg1[%c145] : memref<162xf32, #tpu.memory_space<smem>>
    %675 = vector.broadcast %674 : f32 to vector<6x4xf32>
    %676 = arith.mulf %675, %657 : vector<6x4xf32>
    %677 = arith.addf %651, %676 : vector<6x4xf32>
    %c154 = arith.constant 154 : index
    %678 = memref.load %arg1[%c154] : memref<162xf32, #tpu.memory_space<smem>>
    %679 = vector.broadcast %678 : f32 to vector<6x4xf32>
    %680 = arith.mulf %679, %657 : vector<6x4xf32>
    %681 = arith.addf %655, %680 : vector<6x4xf32>
    %c2_83 = arith.constant 2 : index
    %c14_84 = arith.constant 14 : index
    %c15_85 = arith.constant 15 : index
    %682 = vector.load %arg0[%c2_83, %c14_84, %c15_85] : memref<3x32x32xf32, #tpu.memory_space<vmem>>, vector<1x6x4xf32>
    %683 = vector.shape_cast %682 : vector<1x6x4xf32> to vector<6x4xf32>
    %c108 = arith.constant 108 : index
    %684 = memref.load %arg1[%c108] : memref<162xf32, #tpu.memory_space<smem>>
    %685 = vector.broadcast %684 : f32 to vector<6x4xf32>
    %686 = arith.mulf %685, %683 : vector<6x4xf32>
    %687 = arith.addf %661, %686 : vector<6x4xf32>
    %c117 = arith.constant 117 : index
    %688 = memref.load %arg1[%c117] : memref<162xf32, #tpu.memory_space<smem>>
    %689 = vector.broadcast %688 : f32 to vector<6x4xf32>
    %690 = arith.mulf %689, %683 : vector<6x4xf32>
    %691 = arith.addf %665, %690 : vector<6x4xf32>
    %c126 = arith.constant 126 : index
    %692 = memref.load %arg1[%c126] : memref<162xf32, #tpu.memory_space<smem>>
    %693 = vector.broadcast %692 : f32 to vector<6x4xf32>
    %694 = arith.mulf %693, %683 : vector<6x4xf32>
    %695 = arith.addf %669, %694 : vector<6x4xf32>
    %c135 = arith.constant 135 : index
    %696 = memref.load %arg1[%c135] : memref<162xf32, #tpu.memory_space<smem>>
    %697 = vector.broadcast %696 : f32 to vector<6x4xf32>
    %698 = arith.mulf %697, %683 : vector<6x4xf32>
    %699 = arith.addf %673, %698 : vector<6x4xf32>
    %c144 = arith.constant 144 : index
    %700 = memref.load %arg1[%c144] : memref<162xf32, #tpu.memory_space<smem>>
    %701 = vector.broadcast %700 : f32 to vector<6x4xf32>
    %702 = arith.mulf %701, %683 : vector<6x4xf32>
    %703 = arith.addf %677, %702 : vector<6x4xf32>
    %c153 = arith.constant 153 : index
    %704 = memref.load %arg1[%c153] : memref<162xf32, #tpu.memory_space<smem>>
    %705 = vector.broadcast %704 : f32 to vector<6x4xf32>
    %706 = arith.mulf %705, %683 : vector<6x4xf32>
    %707 = arith.addf %681, %706 : vector<6x4xf32>
    %708 = tpu.iota {dimensions = array<i32: 0>} : vector<11x6xi32>
    %709 = tpu.iota {dimensions = array<i32: 1>} : vector<11x6xi32>
    %c2_i32 = arith.constant 2 : i32
    %710 = vector.broadcast %c2_i32 : i32 to vector<11x6xi32>
    %711 = arith.muli %710, %709 : vector<11x6xi32>
    %c0_i32 = arith.constant 0 : i32
    %712 = vector.broadcast %c0_i32 : i32 to vector<11x6xi32>
    %713 = arith.addi %711, %712 : vector<11x6xi32>
    %714 = arith.cmpi eq, %708, %713 : vector<11x6xi32>
    %cst_86 = arith.constant 1.000000e+00 : f32
    %cst_87 = arith.constant 0.000000e+00 : f32
    %715 = vector.broadcast %cst_86 : f32 to vector<11x6xf32>
    %716 = vector.broadcast %cst_87 : f32 to vector<11x6xf32>
    %717 = arith.select %714, %715, %716 : vector<11x6xi1>, vector<11x6xf32>
    %718 = tpu.iota {dimensions = array<i32: 0>} : vector<4x128xi32>
    %719 = tpu.iota {dimensions = array<i32: 1>} : vector<4x128xi32>
    %c2_i32_88 = arith.constant 2 : i32
    %720 = vector.broadcast %c2_i32_88 : i32 to vector<4x128xi32>
    %721 = arith.muli %720, %718 : vector<4x128xi32>
    %c1_i32 = arith.constant 1 : i32
    %722 = vector.broadcast %c1_i32 : i32 to vector<4x128xi32>
    %723 = arith.addi %721, %722 : vector<4x128xi32>
    %724 = arith.cmpi eq, %719, %723 : vector<4x128xi32>
    %cst_89 = arith.constant 1.000000e+00 : f32
    %cst_90 = arith.constant 0.000000e+00 : f32
    %725 = vector.broadcast %cst_89 : f32 to vector<4x128xf32>
    %726 = vector.broadcast %cst_90 : f32 to vector<4x128xf32>
    %727 = arith.select %724, %725, %726 : vector<4x128xi1>, vector<4x128xf32>
    %cst_91 = arith.constant dense<0.000000e+00> : vector<6x128xf32>
    %728 = tpu.matmul %687, %727, %cst_91 {dimension_numbers = #tpu.dot_dimension_numbers<[1], [0], [0], [1], [0, 0, 1, 1], [], []>} : vector<6x4xf32>, vector<4x128xf32>, vector<6x128xf32> -> vector<6x128xf32>
    %cst_92 = arith.constant dense<0.000000e+00> : vector<11x128xf32>
    %729 = tpu.matmul %717, %728, %cst_92 {dimension_numbers = #tpu.dot_dimension_numbers<[1], [0], [0], [1], [0, 0, 1, 1], [], []>} : vector<11x6xf32>, vector<6x128xf32>, vector<11x128xf32> -> vector<11x128xf32>
    %c0_93 = arith.constant 0 : index
    %730 = memref.load %arg2[%c0_93] : memref<6xf32, #tpu.memory_space<smem>>
    %731 = vector.broadcast %730 : f32 to vector<11x128xf32>
    %732 = arith.addf %729, %731 : vector<11x128xf32>
    %733 = math.tanh %732 : vector<11x128xf32>
    %c0_94 = arith.constant 0 : index
    %c0_95 = arith.constant 0 : index
    %c0_96 = arith.constant 0 : index
    %734 = vector.load %arg3[%c0_94, %c0_95, %c0_96] : memref<6x11x128xf32, #tpu.memory_space<vmem>>, vector<1x11x128xf32>
    %735 = vector.shape_cast %734 : vector<1x11x128xf32> to vector<11x128xf32>
    %736 = vector.shape_cast %733 : vector<11x128xf32> to vector<1x11x128xf32>
    tpu.vector_store %arg3[%c0_94, %c0_95, %c0_96], %736 {strides = array<i32>} : memref<6x11x128xf32, #tpu.memory_space<vmem>>, vector<1x11x128xf32>,
    %cst_97 = arith.constant dense<0.000000e+00> : vector<6x128xf32>
    %737 = tpu.matmul %691, %727, %cst_97 {dimension_numbers = #tpu.dot_dimension_numbers<[1], [0], [0], [1], [0, 0, 1, 1], [], []>} : vector<6x4xf32>, vector<4x128xf32>, vector<6x128xf32> -> vector<6x128xf32>
    %cst_98 = arith.constant dense<0.000000e+00> : vector<11x128xf32>
    %738 = tpu.matmul %717, %737, %cst_98 {dimension_numbers = #tpu.dot_dimension_numbers<[1], [0], [0], [1], [0, 0, 1, 1], [], []>} : vector<11x6xf32>, vector<6x128xf32>, vector<11x128xf32> -> vector<11x128xf32>
    %c1_99 = arith.constant 1 : index
    %739 = memref.load %arg2[%c1_99] : memref<6xf32, #tpu.memory_space<smem>>
    %740 = vector.broadcast %739 : f32 to vector<11x128xf32>
    %741 = arith.addf %738, %740 : vector<11x128xf32>
    %742 = math.tanh %741 : vector<11x128xf32>
    %c1_100 = arith.constant 1 : index
    %c0_101 = arith.constant 0 : index
    %c0_102 = arith.constant 0 : index
    %743 = vector.load %arg3[%c1_100, %c0_101, %c0_102] : memref<6x11x128xf32, #tpu.memory_space<vmem>>, vector<1x11x128xf32>
    %744 = vector.shape_cast %743 : vector<1x11x128xf32> to vector<11x128xf32>
    %745 = vector.shape_cast %742 : vector<11x128xf32> to vector<1x11x128xf32>
    tpu.vector_store %arg3[%c1_100, %c0_101, %c0_102], %745 {strides = array<i32>} : memref<6x11x128xf32, #tpu.memory_space<vmem>>, vector<1x11x128xf32>,
    %cst_103 = arith.constant dense<0.000000e+00> : vector<6x128xf32>
    %746 = tpu.matmul %695, %727, %cst_103 {dimension_numbers = #tpu.dot_dimension_numbers<[1], [0], [0], [1], [0, 0, 1, 1], [], []>} : vector<6x4xf32>, vector<4x128xf32>, vector<6x128xf32> -> vector<6x128xf32>
    %cst_104 = arith.constant dense<0.000000e+00> : vector<11x128xf32>
    %747 = tpu.matmul %717, %746, %cst_104 {dimension_numbers = #tpu.dot_dimension_numbers<[1], [0], [0], [1], [0, 0, 1, 1], [], []>} : vector<11x6xf32>, vector<6x128xf32>, vector<11x128xf32> -> vector<11x128xf32>
    %c2_105 = arith.constant 2 : index
    %748 = memref.load %arg2[%c2_105] : memref<6xf32, #tpu.memory_space<smem>>
    %749 = vector.broadcast %748 : f32 to vector<11x128xf32>
    %750 = arith.addf %747, %749 : vector<11x128xf32>
    %751 = math.tanh %750 : vector<11x128xf32>
    %c2_106 = arith.constant 2 : index
    %c0_107 = arith.constant 0 : index
    %c0_108 = arith.constant 0 : index
    %752 = vector.load %arg3[%c2_106, %c0_107, %c0_108] : memref<6x11x128xf32, #tpu.memory_space<vmem>>, vector<1x11x128xf32>
    %753 = vector.shape_cast %752 : vector<1x11x128xf32> to vector<11x128xf32>
    %754 = vector.shape_cast %751 : vector<11x128xf32> to vector<1x11x128xf32>
    tpu.vector_store %arg3[%c2_106, %c0_107, %c0_108], %754 {strides = array<i32>} : memref<6x11x128xf32, #tpu.memory_space<vmem>>, vector<1x11x128xf32>,
    %cst_109 = arith.constant dense<0.000000e+00> : vector<6x128xf32>
    %755 = tpu.matmul %699, %727, %cst_109 {dimension_numbers = #tpu.dot_dimension_numbers<[1], [0], [0], [1], [0, 0, 1, 1], [], []>} : vector<6x4xf32>, vector<4x128xf32>, vector<6x128xf32> -> vector<6x128xf32>
    %cst_110 = arith.constant dense<0.000000e+00> : vector<11x128xf32>
    %756 = tpu.matmul %717, %755, %cst_110 {dimension_numbers = #tpu.dot_dimension_numbers<[1], [0], [0], [1], [0, 0, 1, 1], [], []>} : vector<11x6xf32>, vector<6x128xf32>, vector<11x128xf32> -> vector<11x128xf32>
    %c3_111 = arith.constant 3 : index
    %757 = memref.load %arg2[%c3_111] : memref<6xf32, #tpu.memory_space<smem>>
    %758 = vector.broadcast %757 : f32 to vector<11x128xf32>
    %759 = arith.addf %756, %758 : vector<11x128xf32>
    %760 = math.tanh %759 : vector<11x128xf32>
    %c3_112 = arith.constant 3 : index
    %c0_113 = arith.constant 0 : index
    %c0_114 = arith.constant 0 : index
    %761 = vector.load %arg3[%c3_112, %c0_113, %c0_114] : memref<6x11x128xf32, #tpu.memory_space<vmem>>, vector<1x11x128xf32>
    %762 = vector.shape_cast %761 : vector<1x11x128xf32> to vector<11x128xf32>
    %763 = vector.shape_cast %760 : vector<11x128xf32> to vector<1x11x128xf32>
    tpu.vector_store %arg3[%c3_112, %c0_113, %c0_114], %763 {strides = array<i32>} : memref<6x11x128xf32, #tpu.memory_space<vmem>>, vector<1x11x128xf32>,
    %cst_115 = arith.constant dense<0.000000e+00> : vector<6x128xf32>
    %764 = tpu.matmul %703, %727, %cst_115 {dimension_numbers = #tpu.dot_dimension_numbers<[1], [0], [0], [1], [0, 0, 1, 1], [], []>} : vector<6x4xf32>, vector<4x128xf32>, vector<6x128xf32> -> vector<6x128xf32>
    %cst_116 = arith.constant dense<0.000000e+00> : vector<11x128xf32>
    %765 = tpu.matmul %717, %764, %cst_116 {dimension_numbers = #tpu.dot_dimension_numbers<[1], [0], [0], [1], [0, 0, 1, 1], [], []>} : vector<11x6xf32>, vector<6x128xf32>, vector<11x128xf32> -> vector<11x128xf32>
    %c4_117 = arith.constant 4 : index
    %766 = memref.load %arg2[%c4_117] : memref<6xf32, #tpu.memory_space<smem>>
    %767 = vector.broadcast %766 : f32 to vector<11x128xf32>
    %768 = arith.addf %765, %767 : vector<11x128xf32>
    %769 = math.tanh %768 : vector<11x128xf32>
    %c4_118 = arith.constant 4 : index
    %c0_119 = arith.constant 0 : index
    %c0_120 = arith.constant 0 : index
    %770 = vector.load %arg3[%c4_118, %c0_119, %c0_120] : memref<6x11x128xf32, #tpu.memory_space<vmem>>, vector<1x11x128xf32>
    %771 = vector.shape_cast %770 : vector<1x11x128xf32> to vector<11x128xf32>
    %772 = vector.shape_cast %769 : vector<11x128xf32> to vector<1x11x128xf32>
    tpu.vector_store %arg3[%c4_118, %c0_119, %c0_120], %772 {strides = array<i32>} : memref<6x11x128xf32, #tpu.memory_space<vmem>>, vector<1x11x128xf32>,
    %cst_121 = arith.constant dense<0.000000e+00> : vector<6x128xf32>
    %773 = tpu.matmul %707, %727, %cst_121 {dimension_numbers = #tpu.dot_dimension_numbers<[1], [0], [0], [1], [0, 0, 1, 1], [], []>} : vector<6x4xf32>, vector<4x128xf32>, vector<6x128xf32> -> vector<6x128xf32>
    %cst_122 = arith.constant dense<0.000000e+00> : vector<11x128xf32>
    %774 = tpu.matmul %717, %773, %cst_122 {dimension_numbers = #tpu.dot_dimension_numbers<[1], [0], [0], [1], [0, 0, 1, 1], [], []>} : vector<11x6xf32>, vector<6x128xf32>, vector<11x128xf32> -> vector<11x128xf32>
    %c5_123 = arith.constant 5 : index
    %775 = memref.load %arg2[%c5_123] : memref<6xf32, #tpu.memory_space<smem>>
    %776 = vector.broadcast %775 : f32 to vector<11x128xf32>
    %777 = arith.addf %774, %776 : vector<11x128xf32>
    %778 = math.tanh %777 : vector<11x128xf32>
    %c5_124 = arith.constant 5 : index
    %c0_125 = arith.constant 0 : index
    %c0_126 = arith.constant 0 : index
    %779 = vector.load %arg3[%c5_124, %c0_125, %c0_126] : memref<6x11x128xf32, #tpu.memory_space<vmem>>, vector<1x11x128xf32>
    %780 = vector.shape_cast %779 : vector<1x11x128xf32> to vector<11x128xf32>
    %781 = vector.shape_cast %778 : vector<11x128xf32> to vector<1x11x128xf32>
    tpu.vector_store %arg3[%c5_124, %c0_125, %c0_126], %781 {strides = array<i32>} : memref<6x11x128xf32, #tpu.memory_space<vmem>>, vector<1x11x128xf32>,
    return
  }
}

</mosaic_0001>

<llo_original>
// kernel: conv_transpose_tanh.1
$region0: #{conv_transpose_tanh.1}
  #allocation0 [shape = 'u32[]', space=smem, size = 0x4, offset = 0x4, fixed_abs, tag = 'smem constant byte address 0x4 - core index']
  #allocation1 [shape = 'u32[144,128]{1,0:T(1,128)}', space=vmem, size = 0x12000, scoped, tag = 'internal scratch']
  %s0 = inlined_call_operand.vmem [shape: f32[3,32,32], index: 0, kind: input, shape index: {}]
  %s1 = inlined_call_operand.vmem [shape: f32[162], index: 1, kind: input, shape index: {}]
  %s2 = inlined_call_operand.vmem [shape: f32[6], index: 2, kind: input, shape index: {}]
  %s3 = inlined_call_operand.vmem [shape: f32[6,11,128], index: 3, kind: output, shape index: {}]
  %s4 = sld [smem:[#allocation0]]
  $region30: #{conv_transpose_tanh.1} parent=0
    _
  %s6 = ssub.s32 1, %s4
  %s7 = scalar_select 0, %s6, %s4
  $region1: #{conv_transpose_tanh.1} parent=0
    #allocation2 [shape = 'u8[1024]{0}', space=smem, size = 0x400, scoped, tag = 'input window, operand 1, single buffered']
    #allocation3 [shape = 's32[1]{0}', space=sflag, size = 0x4, scoped, tag = 'scoped memory for conv_transpose_tanh.1']
    #allocation4 [shape = 'u8[512]{0}', space=smem, size = 0x200, scoped, tag = 'input window, operand 2, single buffered']
    #allocation5 [shape = 's32[1]{0}', space=sflag, size = 0x4, scoped, tag = 'scoped memory for conv_transpose_tanh.1']
    %8 = vsyncpa [#allocation3], 0
    %9 = vsyncpa [#allocation5], 0
    // Predicated region
    $region2: #{conv_transpose_tanh.1} parent=1 // pred_check
      _
    $region3: #{conv_transpose_tanh.1} parent=1 // pred_check_branch
      %11 = sbr.rel (0) target = $region5
    $region4: #{conv_transpose_tanh.1} parent=1 // pred_region
      _
    $region5: #{conv_transpose_tanh.1} parent=1 // pred_fallthru
      _
    // Predicated region
    $region6: #{conv_transpose_tanh.1} parent=1 // pred_check
      _
    $region7: #{conv_transpose_tanh.1} parent=1 // pred_check_branch
      %13 = sbr.rel (0) target = $region9
    $region8: #{conv_transpose_tanh.1} parent=1 // pred_region
      %s15 = ssub.s32 32, 32
      %16 = vsyncadd [#allocation3], %s15
      %s18 = sshll.u32 %s1, 4
      %s19 = int_to_ptr.vmem [resolvable:$true] %s18
      %21 = dma.vmem_to_smem %s19, 32, [#allocation2], [#allocation3]
    $region9: #{conv_transpose_tanh.1} parent=1 // pred_fallthru
      _
    // Predicated region
    $region10: #{conv_transpose_tanh.1} parent=1 // pred_check
      _
    $region11: #{conv_transpose_tanh.1} parent=1 // pred_check_branch
      %23 = sbr.rel (0) target = $region13
    $region12: #{conv_transpose_tanh.1} parent=1 // pred_region
      %s25 = ssub.s32 16, 16
      %26 = vsyncadd [#allocation5], %s25
      %s28 = sshll.u32 %s2, 4
      %s29 = int_to_ptr.vmem [resolvable:$true] %s28
      %31 = dma.vmem_to_smem %s29, 16, [#allocation4], [#allocation5]
    $region13: #{conv_transpose_tanh.1} parent=1 // pred_fallthru
      _
    // Predicated region
    $region14: #{conv_transpose_tanh.1} parent=1 // pred_check
      _
    $region15: #{conv_transpose_tanh.1} parent=1 // pred_check_branch
      %33 = sbr.rel (0) target = $region17
    $region16: #{conv_transpose_tanh.1} parent=1 // pred_region
      %34 = dma.done [#allocation3], 32
    $region17: #{conv_transpose_tanh.1} parent=1 // pred_fallthru
      _
    // Predicated region
    $region18: #{conv_transpose_tanh.1} parent=1 // pred_check
      _
    $region19: #{conv_transpose_tanh.1} parent=1 // pred_check_branch
      %36 = sbr.rel (0) target = $region21
    $region20: #{conv_transpose_tanh.1} parent=1 // pred_region
      %37 = dma.done [#allocation5], 16
    $region21: #{conv_transpose_tanh.1} parent=1 // pred_fallthru
      _
    %38 = sfence
    %v39 = vld [vmem:[%s0 + $0xc] sm:$0x3f]
    %s40 = sld [smem:[#allocation2 + $0x8]]
    %v41 = vstv %s40
    %v42 = vmul.f32 %v41, %v39
    %v43 = vadd.f32 %v42, 0.0
    %s44 = sld [smem:[#allocation2 + $0x11]]
    %v45 = vstv %s44
    %v46 = vmul.f32 %v45, %v39
    %v47 = vadd.f32 %v46, 0.0
    %s48 = sld [smem:[#allocation2 + $0x1a]]
    %v49 = vstv %s48
    %v50 = vmul.f32 %v49, %v39
    %v51 = vadd.f32 %v50, 0.0
    %s52 = sld [smem:[#allocation2 + $0x23]]
    %v53 = vstv %s52
    %v54 = vmul.f32 %v53, %v39
    %v55 = vadd.f32 %v54, 0.0
    %s56 = sld [smem:[#allocation2 + $0x2c]]
    %v57 = vstv %s56
    %v58 = vmul.f32 %v57, %v39
    %v59 = vadd.f32 %v58, 0.0
    %s60 = sld [smem:[#allocation2 + $0x35]]
    %v61 = vstv %s60
    %v62 = vmul.f32 %v61, %v39
    %v63 = vadd.f32 %v62, 0.0
    %s64 = sld [smem:[#allocation2 + $0x7]]
    %v65 = vstv %s64
    %v66 = vmul.f32 %v65, %v39
    %68 = vrot.lane.b32.xlu0 %v66, 127
    %v69 = vpop.permute.xlu0 %68
    %v71 = vadd.f32 %v43, %v69
    %s72 = sld [smem:[#allocation2 + $0x10]]
    %v73 = vstv %s72
    %v74 = vmul.f32 %v73, %v39
    %76 = vrot.lane.b32.xlu0 %v74, 127
    %v77 = vpop.permute.xlu0 %76
    %v79 = vadd.f32 %v47, %v77
    %s80 = sld [smem:[#allocation2 + $0x19]]
    %v81 = vstv %s80
    %v82 = vmul.f32 %v81, %v39
    %84 = vrot.lane.b32.xlu0 %v82, 127
    %v85 = vpop.permute.xlu0 %84
    %v87 = vadd.f32 %v51, %v85
    %s88 = sld [smem:[#allocation2 + $0x22]]
    %v89 = vstv %s88
    %v90 = vmul.f32 %v89, %v39
    %92 = vrot.lane.b32.xlu0 %v90, 127
    %v93 = vpop.permute.xlu0 %92
    %v95 = vadd.f32 %v55, %v93
    %s96 = sld [smem:[#allocation2 + $0x2b]]
    %v97 = vstv %s96
    %v98 = vmul.f32 %v97, %v39
    %100 = vrot.lane.b32.xlu0 %v98, 127
    %v101 = vpop.permute.xlu0 %100
    %v103 = vadd.f32 %v59, %v101
    %s104 = sld [smem:[#allocation2 + $0x34]]
    %v105 = vstv %s104
    %v106 = vmul.f32 %v105, %v39
    %108 = vrot.lane.b32.xlu0 %v106, 127
    %v109 = vpop.permute.xlu0 %108
    %v111 = vadd.f32 %v63, %v109
    %s112 = sld [smem:[#allocation2 + $0x6]]
    %v113 = vstv %s112
    %v114 = vmul.f32 %v113, %v39
    %116 = vrot.lane.b32.xlu0 %v114, 126
    %v117 = vpop.permute.xlu0 %116
    %v119 = vadd.f32 %v71, %v117
    %s120 = sld [smem:[#allocation2 + $0xf]]
    %v121 = vstv %s120
    %v122 = vmul.f32 %v121, %v39
    %124 = vrot.lane.b32.xlu0 %v122, 126
    %v125 = vpop.permute.xlu0 %124
    %v127 = vadd.f32 %v79, %v125
    %s128 = sld [smem:[#allocation2 + $0x18]]
    %v129 = vstv %s128
    %v130 = vmul.f32 %v129, %v39
    %132 = vrot.lane.b32.xlu0 %v130, 126
    %v133 = vpop.permute.xlu0 %132
    %v135 = vadd.f32 %v87, %v133
    %s136 = sld [smem:[#allocation2 + $0x21]]
    %v137 = vstv %s136
    %v138 = vmul.f32 %v137, %v39
    %140 = vrot.lane.b32.xlu0 %v138, 126
    %v141 = vpop.permute.xlu0 %140
    %v143 = vadd.f32 %v95, %v141
    %s144 = sld [smem:[#allocation2 + $0x2a]]
    %v145 = vstv %s144
    %v146 = vmul.f32 %v145, %v39
    %148 = vrot.lane.b32.xlu0 %v146, 126
    %v149 = vpop.permute.xlu0 %148
    %v151 = vadd.f32 %v103, %v149
    %s152 = sld [smem:[#allocation2 + $0x33]]
    %v153 = vstv %s152
    %v154 = vmul.f32 %v153, %v39
    %156 = vrot.lane.b32.xlu0 %v154, 126
    %v157 = vpop.permute.xlu0 %156
    %v159 = vadd.f32 %v111, %v157
    %v160 = vld [vmem:[%s0 + $0xd] sm:$0x3f]
    %s161 = sld [smem:[#allocation2 + $0x5]]
    %v162 = vstv %s161
    %v163 = vmul.f32 %v162, %v160
    %v164 = vadd.f32 %v119, %v163
    %s165 = sld [smem:[#allocation2 + $0xe]]
    %v166 = vstv %s165
    %v167 = vmul.f32 %v166, %v160
    %v168 = vadd.f32 %v127, %v167
    %s169 = sld [smem:[#allocation2 + $0x17]]
    %v170 = vstv %s169
    %v171 = vmul.f32 %v170, %v160
    %v172 = vadd.f32 %v135, %v171
    %s173 = sld [smem:[#allocation2 + $0x20]]
    %v174 = vstv %s173
    %v175 = vmul.f32 %v174, %v160
    %v176 = vadd.f32 %v143, %v175
    %s177 = sld [smem:[#allocation2 + $0x29]]
    %v178 = vstv %s177
    %v179 = vmul.f32 %v178, %v160
    %v180 = vadd.f32 %v151, %v179
    %s181 = sld [smem:[#allocation2 + $0x32]]
    %v182 = vstv %s181
    %v183 = vmul.f32 %v182, %v160
    %v184 = vadd.f32 %v159, %v183
    %s185 = sld [smem:[#allocation2 + $0x4]]
    %v186 = vstv %s185
    %v187 = vmul.f32 %v186, %v160
    %189 = vrot.lane.b32.xlu0 %v187, 127
    %v190 = vpop.permute.xlu0 %189
    %v192 = vadd.f32 %v164, %v190
    %s193 = sld [smem:[#allocation2 + $0xd]]
    %v194 = vstv %s193
    %v195 = vmul.f32 %v194, %v160
    %197 = vrot.lane.b32.xlu0 %v195, 127
    %v198 = vpop.permute.xlu0 %197
    %v200 = vadd.f32 %v168, %v198
    %s201 = sld [smem:[#allocation2 + $0x16]]
    %v202 = vstv %s201
    %v203 = vmul.f32 %v202, %v160
    %205 = vrot.lane.b32.xlu0 %v203, 127
    %v206 = vpop.permute.xlu0 %205
    %v208 = vadd.f32 %v172, %v206
    %s209 = sld [smem:[#allocation2 + $0x1f]]
    %v210 = vstv %s209
    %v211 = vmul.f32 %v210, %v160
    %213 = vrot.lane.b32.xlu0 %v211, 127
    %v214 = vpop.permute.xlu0 %213
    %v216 = vadd.f32 %v176, %v214
    %s217 = sld [smem:[#allocation2 + $0x28]]
    %v218 = vstv %s217
    %v219 = vmul.f32 %v218, %v160
    %221 = vrot.lane.b32.xlu0 %v219, 127
    %v222 = vpop.permute.xlu0 %221
    %v224 = vadd.f32 %v180, %v222
    %s225 = sld [smem:[#allocation2 + $0x31]]
    %v226 = vstv %s225
    %v227 = vmul.f32 %v226, %v160
    %229 = vrot.lane.b32.xlu0 %v227, 127
    %v230 = vpop.permute.xlu0 %229
    %v232 = vadd.f32 %v184, %v230
    %s233 = sld [smem:[#allocation2 + $0x3]]
    %v234 = vstv %s233
    %v235 = vmul.f32 %v234, %v160
    %237 = vrot.lane.b32.xlu0 %v235, 126
    %v238 = vpop.permute.xlu0 %237
    %v240 = vadd.f32 %v192, %v238
    %s241 = sld [smem:[#allocation2 + $0xc]]
    %v242 = vstv %s241
    %v243 = vmul.f32 %v242, %v160
    %245 = vrot.lane.b32.xlu0 %v243, 126
    %v246 = vpop.permute.xlu0 %245
    %v248 = vadd.f32 %v200, %v246
    %s249 = sld [smem:[#allocation2 + $0x15]]
    %v250 = vstv %s249
    %v251 = vmul.f32 %v250, %v160
    %253 = vrot.lane.b32.xlu0 %v251, 126
    %v254 = vpop.permute.xlu0 %253
    %v256 = vadd.f32 %v208, %v254
    %s257 = sld [smem:[#allocation2 + $0x1e]]
    %v258 = vstv %s257
    %v259 = vmul.f32 %v258, %v160
    %261 = vrot.lane.b32.xlu0 %v259, 126
    %v262 = vpop.permute.xlu0 %261
    %v264 = vadd.f32 %v216, %v262
    %s265 = sld [smem:[#allocation2 + $0x27]]
    %v266 = vstv %s265
    %v267 = vmul.f32 %v266, %v160
    %269 = vrot.lane.b32.xlu0 %v267, 126
    %v270 = vpop.permute.xlu0 %269
    %v272 = vadd.f32 %v224, %v270
    %s273 = sld [smem:[#allocation2 + $0x30]]
    %v274 = vstv %s273
    %v275 = vmul.f32 %v274, %v160
    %277 = vrot.lane.b32.xlu0 %v275, 126
    %v278 = vpop.permute.xlu0 %277
    %v280 = vadd.f32 %v232, %v278
    %v281 = vld [vmem:[%s0 + $0xe] sm:$0x3f]
    %s282 = sld [smem:[#allocation2 + $0x2]]
    %v283 = vstv %s282
    %v284 = vmul.f32 %v283, %v281
    %v285 = vadd.f32 %v240, %v284
    %s286 = sld [smem:[#allocation2 + $0xb]]
    %v287 = vstv %s286
    %v288 = vmul.f32 %v287, %v281
    %v289 = vadd.f32 %v248, %v288
    %s290 = sld [smem:[#allocation2 + $0x14]]
    %v291 = vstv %s290
    %v292 = vmul.f32 %v291, %v281
    %v293 = vadd.f32 %v256, %v292
    %s294 = sld [smem:[#allocation2 + $0x1d]]
    %v295 = vstv %s294
    %v296 = vmul.f32 %v295, %v281
    %v297 = vadd.f32 %v264, %v296
    %s298 = sld [smem:[#allocation2 + $0x26]]
    %v299 = vstv %s298
    %v300 = vmul.f32 %v299, %v281
    %v301 = vadd.f32 %v272, %v300
    %s302 = sld [smem:[#allocation2 + $0x2f]]
    %v303 = vstv %s302
    %v304 = vmul.f32 %v303, %v281
    %v305 = vadd.f32 %v280, %v304
    %s306 = sld [smem:[#allocation2 + $0x1]]
    %v307 = vstv %s306
    %v308 = vmul.f32 %v307, %v281
    %310 = vrot.lane.b32.xlu0 %v308, 127
    %v311 = vpop.permute.xlu0 %310
    %v313 = vadd.f32 %v285, %v311
    %s314 = sld [smem:[#allocation2 + $0xa]]
    %v315 = vstv %s314
    %v316 = vmul.f32 %v315, %v281
    %318 = vrot.lane.b32.xlu0 %v316, 127
    %v319 = vpop.permute.xlu0 %318
    %v321 = vadd.f32 %v289, %v319
    %s322 = sld [smem:[#allocation2 + $0x13]]
    %v323 = vstv %s322
    %v324 = vmul.f32 %v323, %v281
    %326 = vrot.lane.b32.xlu0 %v324, 127
    %v327 = vpop.permute.xlu0 %326
    %v329 = vadd.f32 %v293, %v327
    %s330 = sld [smem:[#allocation2 + $0x1c]]
    %v331 = vstv %s330
    %v332 = vmul.f32 %v331, %v281
    %334 = vrot.lane.b32.xlu0 %v332, 127
    %v335 = vpop.permute.xlu0 %334
    %v337 = vadd.f32 %v297, %v335
    %s338 = sld [smem:[#allocation2 + $0x25]]
    %v339 = vstv %s338
    %v340 = vmul.f32 %v339, %v281
    %342 = vrot.lane.b32.xlu0 %v340, 127
    %v343 = vpop.permute.xlu0 %342
    %v345 = vadd.f32 %v301, %v343
    %s346 = sld [smem:[#allocation2 + $0x2e]]
    %v347 = vstv %s346
    %v348 = vmul.f32 %v347, %v281
    %350 = vrot.lane.b32.xlu0 %v348, 127
    %v351 = vpop.permute.xlu0 %350
    %v353 = vadd.f32 %v305, %v351
    %s354 = sld [smem:[#allocation2]]
    %v355 = vstv %s354
    %v356 = vmul.f32 %v355, %v281
    %358 = vrot.lane.b32.xlu0 %v356, 126
    %v359 = vpop.permute.xlu0 %358
    %v361 = vadd.f32 %v313, %v359
    %s362 = sld [smem:[#allocation2 + $0x9]]
    %v363 = vstv %s362
    %v364 = vmul.f32 %v363, %v281
    %366 = vrot.lane.b32.xlu0 %v364, 126
    %v367 = vpop.permute.xlu0 %366
    %v369 = vadd.f32 %v321, %v367
    %s370 = sld [smem:[#allocation2 + $0x12]]
    %v371 = vstv %s370
    %v372 = vmul.f32 %v371, %v281
    %374 = vrot.lane.b32.xlu0 %v372, 126
    %v375 = vpop.permute.xlu0 %374
    %v377 = vadd.f32 %v329, %v375
    %s378 = sld [smem:[#allocation2 + $0x1b]]
    %v379 = vstv %s378
    %v380 = vmul.f32 %v379, %v281
    %382 = vrot.lane.b32.xlu0 %v380, 126
    %v383 = vpop.permute.xlu0 %382
    %v385 = vadd.f32 %v337, %v383
    %s386 = sld [smem:[#allocation2 + $0x24]]
    %v387 = vstv %s386
    %v388 = vmul.f32 %v387, %v281
    %390 = vrot.lane.b32.xlu0 %v388, 126
    %v391 = vpop.permute.xlu0 %390
    %v393 = vadd.f32 %v345, %v391
    %s394 = sld [smem:[#allocation2 + $0x2d]]
    %v395 = vstv %s394
    %v396 = vmul.f32 %v395, %v281
    %398 = vrot.lane.b32.xlu0 %v396, 126
    %v399 = vpop.permute.xlu0 %398
    %v401 = vadd.f32 %v353, %v399
    %s402 = scalar_lea.vmem %s0, 32
    %v403 = vld [vmem:[%s402 + $0xc] sm:$0x3f]
    %s404 = sld [smem:[#allocation2 + $0x3e]]
    %v405 = vstv %s404
    %v406 = vmul.f32 %v405, %v403
    %v407 = vadd.f32 %v361, %v406
    %s408 = sld [smem:[#allocation2 + $0x47]]
    %v409 = vstv %s408
    %v410 = vmul.f32 %v409, %v403
    %v411 = vadd.f32 %v369, %v410
    %s412 = sld [smem:[#allocation2 + $0x50]]
    %v413 = vstv %s412
    %v414 = vmul.f32 %v413, %v403
    %v415 = vadd.f32 %v377, %v414
    %s416 = sld [smem:[#allocation2 + $0x59]]
    %v417 = vstv %s416
    %v418 = vmul.f32 %v417, %v403
    %v419 = vadd.f32 %v385, %v418
    %s420 = sld [smem:[#allocation2 + $0x62]]
    %v421 = vstv %s420
    %v422 = vmul.f32 %v421, %v403
    %v423 = vadd.f32 %v393, %v422
    %s424 = sld [smem:[#allocation2 + $0x6b]]
    %v425 = vstv %s424
    %v426 = vmul.f32 %v425, %v403
    %v427 = vadd.f32 %v401, %v426
    %s428 = sld [smem:[#allocation2 + $0x3d]]
    %v429 = vstv %s428
    %v430 = vmul.f32 %v429, %v403
    %432 = vrot.lane.b32.xlu0 %v430, 127
    %v433 = vpop.permute.xlu0 %432
    %v435 = vadd.f32 %v407, %v433
    %s436 = sld [smem:[#allocation2 + $0x46]]
    %v437 = vstv %s436
    %v438 = vmul.f32 %v437, %v403
    %440 = vrot.lane.b32.xlu0 %v438, 127
    %v441 = vpop.permute.xlu0 %440
    %v443 = vadd.f32 %v411, %v441
    %s444 = sld [smem:[#allocation2 + $0x4f]]
    %v445 = vstv %s444
    %v446 = vmul.f32 %v445, %v403
    %448 = vrot.lane.b32.xlu0 %v446, 127
    %v449 = vpop.permute.xlu0 %448
    %v451 = vadd.f32 %v415, %v449
    %s452 = sld [smem:[#allocation2 + $0x58]]
    %v453 = vstv %s452
    %v454 = vmul.f32 %v453, %v403
    %456 = vrot.lane.b32.xlu0 %v454, 127
    %v457 = vpop.permute.xlu0 %456
    %v459 = vadd.f32 %v419, %v457
    %s460 = sld [smem:[#allocation2 + $0x61]]
    %v461 = vstv %s460
    %v462 = vmul.f32 %v461, %v403
    %464 = vrot.lane.b32.xlu0 %v462, 127
    %v465 = vpop.permute.xlu0 %464
    %v467 = vadd.f32 %v423, %v465
    %s468 = sld [smem:[#allocation2 + $0x6a]]
    %v469 = vstv %s468
    %v470 = vmul.f32 %v469, %v403
    %472 = vrot.lane.b32.xlu0 %v470, 127
    %v473 = vpop.permute.xlu0 %472
    %v475 = vadd.f32 %v427, %v473
    %s476 = sld [smem:[#allocation2 + $0x3c]]
    %v477 = vstv %s476
    %v478 = vmul.f32 %v477, %v403
    %480 = vrot.lane.b32.xlu0 %v478, 126
    %v481 = vpop.permute.xlu0 %480
    %v483 = vadd.f32 %v435, %v481
    %s484 = sld [smem:[#allocation2 + $0x45]]
    %v485 = vstv %s484
    %v486 = vmul.f32 %v485, %v403
    %488 = vrot.lane.b32.xlu0 %v486, 126
    %v489 = vpop.permute.xlu0 %488
    %v491 = vadd.f32 %v443, %v489
    %s492 = sld [smem:[#allocation2 + $0x4e]]
    %v493 = vstv %s492
    %v494 = vmul.f32 %v493, %v403
    %496 = vrot.lane.b32.xlu0 %v494, 126
    %v497 = vpop.permute.xlu0 %496
    %v499 = vadd.f32 %v451, %v497
    %s500 = sld [smem:[#allocation2 + $0x57]]
    %v501 = vstv %s500
    %v502 = vmul.f32 %v501, %v403
    %504 = vrot.lane.b32.xlu0 %v502, 126
    %v505 = vpop.permute.xlu0 %504
    %v507 = vadd.f32 %v459, %v505
    %s508 = sld [smem:[#allocation2 + $0x60]]
    %v509 = vstv %s508
    %v510 = vmul.f32 %v509, %v403
    %512 = vrot.lane.b32.xlu0 %v510, 126
    %v513 = vpop.permute.xlu0 %512
    %v515 = vadd.f32 %v467, %v513
    %s516 = sld [smem:[#allocation2 + $0x69]]
    %v517 = vstv %s516
    %v518 = vmul.f32 %v517, %v403
    %520 = vrot.lane.b32.xlu0 %v518, 126
    %v521 = vpop.permute.xlu0 %520
    %v523 = vadd.f32 %v475, %v521
    %v524 = vld [vmem:[%s402 + $0xd] sm:$0x3f]
    %s525 = sld [smem:[#allocation2 + $0x3b]]
    %v526 = vstv %s525
    %v527 = vmul.f32 %v526, %v524
    %v528 = vadd.f32 %v483, %v527
    %s529 = sld [smem:[#allocation2 + $0x44]]
    %v530 = vstv %s529
    %v531 = vmul.f32 %v530, %v524
    %v532 = vadd.f32 %v491, %v531
    %s533 = sld [smem:[#allocation2 + $0x4d]]
    %v534 = vstv %s533
    %v535 = vmul.f32 %v534, %v524
    %v536 = vadd.f32 %v499, %v535
    %s537 = sld [smem:[#allocation2 + $0x56]]
    %v538 = vstv %s537
    %v539 = vmul.f32 %v538, %v524
    %v540 = vadd.f32 %v507, %v539
    %s541 = sld [smem:[#allocation2 + $0x5f]]
    %v542 = vstv %s541
    %v543 = vmul.f32 %v542, %v524
    %v544 = vadd.f32 %v515, %v543
    %s545 = sld [smem:[#allocation2 + $0x68]]
    %v546 = vstv %s545
    %v547 = vmul.f32 %v546, %v524
    %v548 = vadd.f32 %v523, %v547
    %s549 = sld [smem:[#allocation2 + $0x3a]]
    %v550 = vstv %s549
    %v551 = vmul.f32 %v550, %v524
    %553 = vrot.lane.b32.xlu0 %v551, 127
    %v554 = vpop.permute.xlu0 %553
    %v556 = vadd.f32 %v528, %v554
    %s557 = sld [smem:[#allocation2 + $0x43]]
    %v558 = vstv %s557
    %v559 = vmul.f32 %v558, %v524
    %561 = vrot.lane.b32.xlu0 %v559, 127
    %v562 = vpop.permute.xlu0 %561
    %v564 = vadd.f32 %v532, %v562
    %s565 = sld [smem:[#allocation2 + $0x4c]]
    %v566 = vstv %s565
    %v567 = vmul.f32 %v566, %v524
    %569 = vrot.lane.b32.xlu0 %v567, 127
    %v570 = vpop.permute.xlu0 %569
    %v572 = vadd.f32 %v536, %v570
    %s573 = sld [smem:[#allocation2 + $0x55]]
    %v574 = vstv %s573
    %v575 = vmul.f32 %v574, %v524
    %577 = vrot.lane.b32.xlu0 %v575, 127
    %v578 = vpop.permute.xlu0 %577
    %v580 = vadd.f32 %v540, %v578
    %s581 = sld [smem:[#allocation2 + $0x5e]]
    %v582 = vstv %s581
    %v583 = vmul.f32 %v582, %v524
    %585 = vrot.lane.b32.xlu0 %v583, 127
    %v586 = vpop.permute.xlu0 %585
    %v588 = vadd.f32 %v544, %v586
    %s589 = sld [smem:[#allocation2 + $0x67]]
    %v590 = vstv %s589
    %v591 = vmul.f32 %v590, %v524
    %593 = vrot.lane.b32.xlu0 %v591, 127
    %v594 = vpop.permute.xlu0 %593
    %v596 = vadd.f32 %v548, %v594
    %s597 = sld [smem:[#allocation2 + $0x39]]
    %v598 = vstv %s597
    %v599 = vmul.f32 %v598, %v524
    %601 = vrot.lane.b32.xlu0 %v599, 126
    %v602 = vpop.permute.xlu0 %601
    %v604 = vadd.f32 %v556, %v602
    %s605 = sld [smem:[#allocation2 + $0x42]]
    %v606 = vstv %s605
    %v607 = vmul.f32 %v606, %v524
    %609 = vrot.lane.b32.xlu0 %v607, 126
    %v610 = vpop.permute.xlu0 %609
    %v612 = vadd.f32 %v564, %v610
    %s613 = sld [smem:[#allocation2 + $0x4b]]
    %v614 = vstv %s613
    %v615 = vmul.f32 %v614, %v524
    %617 = vrot.lane.b32.xlu0 %v615, 126
    %v618 = vpop.permute.xlu0 %617
    %v620 = vadd.f32 %v572, %v618
    %s621 = sld [smem:[#allocation2 + $0x54]]
    %v622 = vstv %s621
    %v623 = vmul.f32 %v622, %v524
    %625 = vrot.lane.b32.xlu0 %v623, 126
    %v626 = vpop.permute.xlu0 %625
    %v628 = vadd.f32 %v580, %v626
    %s629 = sld [smem:[#allocation2 + $0x5d]]
    %v630 = vstv %s629
    %v631 = vmul.f32 %v630, %v524
    %633 = vrot.lane.b32.xlu0 %v631, 126
    %v634 = vpop.permute.xlu0 %633
    %v636 = vadd.f32 %v588, %v634
    %s637 = sld [smem:[#allocation2 + $0x66]]
    %v638 = vstv %s637
    %v639 = vmul.f32 %v638, %v524
    %641 = vrot.lane.b32.xlu0 %v639, 126
    %v642 = vpop.permute.xlu0 %641
    %v644 = vadd.f32 %v596, %v642
    %v645 = vld [vmem:[%s402 + $0xe] sm:$0x3f]
    %s646 = sld [smem:[#allocation2 + $0x38]]
    %v647 = vstv %s646
    %v648 = vmul.f32 %v647, %v645
    %v649 = vadd.f32 %v604, %v648
    %s650 = sld [smem:[#allocation2 + $0x41]]
    %v651 = vstv %s650
    %v652 = vmul.f32 %v651, %v645
    %v653 = vadd.f32 %v612, %v652
    %s654 = sld [smem:[#allocation2 + $0x4a]]
    %v655 = vstv %s654
    %v656 = vmul.f32 %v655, %v645
    %v657 = vadd.f32 %v620, %v656
    %s658 = sld [smem:[#allocation2 + $0x53]]
    %v659 = vstv %s658
    %v660 = vmul.f32 %v659, %v645
    %v661 = vadd.f32 %v628, %v660
    %s662 = sld [smem:[#allocation2 + $0x5c]]
    %v663 = vstv %s662
    %v664 = vmul.f32 %v663, %v645
    %v665 = vadd.f32 %v636, %v664
    %s666 = sld [smem:[#allocation2 + $0x65]]
    %v667 = vstv %s666
    %v668 = vmul.f32 %v667, %v645
    %v669 = vadd.f32 %v644, %v668
    %s670 = sld [smem:[#allocation2 + $0x37]]
    %v671 = vstv %s670
    %v672 = vmul.f32 %v671, %v645
    %674 = vrot.lane.b32.xlu0 %v672, 127
    %v675 = vpop.permute.xlu0 %674
    %v677 = vadd.f32 %v649, %v675
    %s678 = sld [smem:[#allocation2 + $0x40]]
    %v679 = vstv %s678
    %v680 = vmul.f32 %v679, %v645
    %682 = vrot.lane.b32.xlu0 %v680, 127
    %v683 = vpop.permute.xlu0 %682
    %v685 = vadd.f32 %v653, %v683
    %s686 = sld [smem:[#allocation2 + $0x49]]
    %v687 = vstv %s686
    %v688 = vmul.f32 %v687, %v645
    %690 = vrot.lane.b32.xlu0 %v688, 127
    %v691 = vpop.permute.xlu0 %690
    %v693 = vadd.f32 %v657, %v691
    %s694 = sld [smem:[#allocation2 + $0x52]]
    %v695 = vstv %s694
    %v696 = vmul.f32 %v695, %v645
    %698 = vrot.lane.b32.xlu0 %v696, 127
    %v699 = vpop.permute.xlu0 %698
    %v701 = vadd.f32 %v661, %v699
    %s702 = sld [smem:[#allocation2 + $0x5b]]
    %v703 = vstv %s702
    %v704 = vmul.f32 %v703, %v645
    %706 = vrot.lane.b32.xlu0 %v704, 127
    %v707 = vpop.permute.xlu0 %706
    %v709 = vadd.f32 %v665, %v707
    %s710 = sld [smem:[#allocation2 + $0x64]]
    %v711 = vstv %s710
    %v712 = vmul.f32 %v711, %v645
    %714 = vrot.lane.b32.xlu0 %v712, 127
    %v715 = vpop.permute.xlu0 %714
    %v717 = vadd.f32 %v669, %v715
    %s718 = sld [smem:[#allocation2 + $0x36]]
    %v719 = vstv %s718
    %v720 = vmul.f32 %v719, %v645
    %722 = vrot.lane.b32.xlu0 %v720, 126
    %v723 = vpop.permute.xlu0 %722
    %v725 = vadd.f32 %v677, %v723
    %s726 = sld [smem:[#allocation2 + $0x3f]]
    %v727 = vstv %s726
    %v728 = vmul.f32 %v727, %v645
    %730 = vrot.lane.b32.xlu0 %v728, 126
    %v731 = vpop.permute.xlu0 %730
    %v733 = vadd.f32 %v685, %v731
    %s734 = sld [smem:[#allocation2 + $0x48]]
    %v735 = vstv %s734
    %v736 = vmul.f32 %v735, %v645
    %738 = vrot.lane.b32.xlu0 %v736, 126
    %v739 = vpop.permute.xlu0 %738
    %v741 = vadd.f32 %v693, %v739
    %s742 = sld [smem:[#allocation2 + $0x51]]
    %v743 = vstv %s742
    %v744 = vmul.f32 %v743, %v645
    %746 = vrot.lane.b32.xlu0 %v744, 126
    %v747 = vpop.permute.xlu0 %746
    %v749 = vadd.f32 %v701, %v747
    %s750 = sld [smem:[#allocation2 + $0x5a]]
    %v751 = vstv %s750
    %v752 = vmul.f32 %v751, %v645
    %754 = vrot.lane.b32.xlu0 %v752, 126
    %v755 = vpop.permute.xlu0 %754
    %v757 = vadd.f32 %v709, %v755
    %s758 = sld [smem:[#allocation2 + $0x63]]
    %v759 = vstv %s758
    %v760 = vmul.f32 %v759, %v645
    %762 = vrot.lane.b32.xlu0 %v760, 126
    %v763 = vpop.permute.xlu0 %762
    %v765 = vadd.f32 %v717, %v763
    %s766 = scalar_lea.vmem %s0, 64
    %v767 = vld [vmem:[%s766 + $0xc] sm:$0x3f]
    %s768 = sld [smem:[#allocation2 + $0x74]]
    %v769 = vstv %s768
    %v770 = vmul.f32 %v769, %v767
    %v771 = vadd.f32 %v725, %v770
    %s772 = sld [smem:[#allocation2 + $0x7d]]
    %v773 = vstv %s772
    %v774 = vmul.f32 %v773, %v767
    %v775 = vadd.f32 %v733, %v774
    %s776 = sld [smem:[#allocation2 + $0x86]]
    %v777 = vstv %s776
    %v778 = vmul.f32 %v777, %v767
    %v779 = vadd.f32 %v741, %v778
    %s780 = sld [smem:[#allocation2 + $0x8f]]
    %v781 = vstv %s780
    %v782 = vmul.f32 %v781, %v767
    %v783 = vadd.f32 %v749, %v782
    %s784 = sld [smem:[#allocation2 + $0x98]]
    %v785 = vstv %s784
    %v786 = vmul.f32 %v785, %v767
    %v787 = vadd.f32 %v757, %v786
    %s788 = sld [smem:[#allocation2 + $0xa1]]
    %v789 = vstv %s788
    %v790 = vmul.f32 %v789, %v767
    %v791 = vadd.f32 %v765, %v790
    %s792 = sld [smem:[#allocation2 + $0x73]]
    %v793 = vstv %s792
    %v794 = vmul.f32 %v793, %v767
    %796 = vrot.lane.b32.xlu0 %v794, 127
    %v797 = vpop.permute.xlu0 %796
    %v799 = vadd.f32 %v771, %v797
    %s800 = sld [smem:[#allocation2 + $0x7c]]
    %v801 = vstv %s800
    %v802 = vmul.f32 %v801, %v767
    %804 = vrot.lane.b32.xlu0 %v802, 127
    %v805 = vpop.permute.xlu0 %804
    %v807 = vadd.f32 %v775, %v805
    %s808 = sld [smem:[#allocation2 + $0x85]]
    %v809 = vstv %s808
    %v810 = vmul.f32 %v809, %v767
    %812 = vrot.lane.b32.xlu0 %v810, 127
    %v813 = vpop.permute.xlu0 %812
    %v815 = vadd.f32 %v779, %v813
    %s816 = sld [smem:[#allocation2 + $0x8e]]
    %v817 = vstv %s816
    %v818 = vmul.f32 %v817, %v767
    %820 = vrot.lane.b32.xlu0 %v818, 127
    %v821 = vpop.permute.xlu0 %820
    %v823 = vadd.f32 %v783, %v821
    %s824 = sld [smem:[#allocation2 + $0x97]]
    %v825 = vstv %s824
    %v826 = vmul.f32 %v825, %v767
    %828 = vrot.lane.b32.xlu0 %v826, 127
    %v829 = vpop.permute.xlu0 %828
    %v831 = vadd.f32 %v787, %v829
    %s832 = sld [smem:[#allocation2 + $0xa0]]
    %v833 = vstv %s832
    %v834 = vmul.f32 %v833, %v767
    %836 = vrot.lane.b32.xlu0 %v834, 127
    %v837 = vpop.permute.xlu0 %836
    %v839 = vadd.f32 %v791, %v837
    %s840 = sld [smem:[#allocation2 + $0x72]]
    %v841 = vstv %s840
    %v842 = vmul.f32 %v841, %v767
    %844 = vrot.lane.b32.xlu0 %v842, 126
    %v845 = vpop.permute.xlu0 %844
    %v847 = vadd.f32 %v799, %v845
    %s848 = sld [smem:[#allocation2 + $0x7b]]
    %v849 = vstv %s848
    %v850 = vmul.f32 %v849, %v767
    %852 = vrot.lane.b32.xlu0 %v850, 126
    %v853 = vpop.permute.xlu0 %852
    %v855 = vadd.f32 %v807, %v853
    %s856 = sld [smem:[#allocation2 + $0x84]]
    %v857 = vstv %s856
    %v858 = vmul.f32 %v857, %v767
    %860 = vrot.lane.b32.xlu0 %v858, 126
    %v861 = vpop.permute.xlu0 %860
    %v863 = vadd.f32 %v815, %v861
    %s864 = sld [smem:[#allocation2 + $0x8d]]
    %v865 = vstv %s864
    %v866 = vmul.f32 %v865, %v767
    %868 = vrot.lane.b32.xlu0 %v866, 126
    %v869 = vpop.permute.xlu0 %868
    %v871 = vadd.f32 %v823, %v869
    %s872 = sld [smem:[#allocation2 + $0x96]]
    %v873 = vstv %s872
    %v874 = vmul.f32 %v873, %v767
    %876 = vrot.lane.b32.xlu0 %v874, 126
    %v877 = vpop.permute.xlu0 %876
    %v879 = vadd.f32 %v831, %v877
    %s880 = sld [smem:[#allocation2 + $0x9f]]
    %v881 = vstv %s880
    %v882 = vmul.f32 %v881, %v767
    %884 = vrot.lane.b32.xlu0 %v882, 126
    %v885 = vpop.permute.xlu0 %884
    %v887 = vadd.f32 %v839, %v885
    %v888 = vld [vmem:[%s766 + $0xd] sm:$0x3f]
    %s889 = sld [smem:[#allocation2 + $0x71]]
    %v890 = vstv %s889
    %v891 = vmul.f32 %v890, %v888
    %v892 = vadd.f32 %v847, %v891
    %s893 = sld [smem:[#allocation2 + $0x7a]]
    %v894 = vstv %s893
    %v895 = vmul.f32 %v894, %v888
    %v896 = vadd.f32 %v855, %v895
    %s897 = sld [smem:[#allocation2 + $0x83]]
    %v898 = vstv %s897
    %v899 = vmul.f32 %v898, %v888
    %v900 = vadd.f32 %v863, %v899
    %s901 = sld [smem:[#allocation2 + $0x8c]]
    %v902 = vstv %s901
    %v903 = vmul.f32 %v902, %v888
    %v904 = vadd.f32 %v871, %v903
    %s905 = sld [smem:[#allocation2 + $0x95]]
    %v906 = vstv %s905
    %v907 = vmul.f32 %v906, %v888
    %v908 = vadd.f32 %v879, %v907
    %s909 = sld [smem:[#allocation2 + $0x9e]]
    %v910 = vstv %s909
    %v911 = vmul.f32 %v910, %v888
    %v912 = vadd.f32 %v887, %v911
    %s913 = sld [smem:[#allocation2 + $0x70]]
    %v914 = vstv %s913
    %v915 = vmul.f32 %v914, %v888
    %917 = vrot.lane.b32.xlu0 %v915, 127
    %v918 = vpop.permute.xlu0 %917
    %v920 = vadd.f32 %v892, %v918
    %s921 = sld [smem:[#allocation2 + $0x79]]
    %v922 = vstv %s921
    %v923 = vmul.f32 %v922, %v888
    %925 = vrot.lane.b32.xlu0 %v923, 127
    %v926 = vpop.permute.xlu0 %925
    %v928 = vadd.f32 %v896, %v926
    %s929 = sld [smem:[#allocation2 + $0x82]]
    %v930 = vstv %s929
    %v931 = vmul.f32 %v930, %v888
    %933 = vrot.lane.b32.xlu0 %v931, 127
    %v934 = vpop.permute.xlu0 %933
    %v936 = vadd.f32 %v900, %v934
    %s937 = sld [smem:[#allocation2 + $0x8b]]
    %v938 = vstv %s937
    %v939 = vmul.f32 %v938, %v888
    %941 = vrot.lane.b32.xlu0 %v939, 127
    %v942 = vpop.permute.xlu0 %941
    %v944 = vadd.f32 %v904, %v942
    %s945 = sld [smem:[#allocation2 + $0x94]]
    %v946 = vstv %s945
    %v947 = vmul.f32 %v946, %v888
    %949 = vrot.lane.b32.xlu0 %v947, 127
    %v950 = vpop.permute.xlu0 %949
    %v952 = vadd.f32 %v908, %v950
    %s953 = sld [smem:[#allocation2 + $0x9d]]
    %v954 = vstv %s953
    %v955 = vmul.f32 %v954, %v888
    %957 = vrot.lane.b32.xlu0 %v955, 127
    %v958 = vpop.permute.xlu0 %957
    %v960 = vadd.f32 %v912, %v958
    %s961 = sld [smem:[#allocation2 + $0x6f]]
    %v962 = vstv %s961
    %v963 = vmul.f32 %v962, %v888
    %965 = vrot.lane.b32.xlu0 %v963, 126
    %v966 = vpop.permute.xlu0 %965
    %v968 = vadd.f32 %v920, %v966
    %s969 = sld [smem:[#allocation2 + $0x78]]
    %v970 = vstv %s969
    %v971 = vmul.f32 %v970, %v888
    %973 = vrot.lane.b32.xlu0 %v971, 126
    %v974 = vpop.permute.xlu0 %973
    %v976 = vadd.f32 %v928, %v974
    %s977 = sld [smem:[#allocation2 + $0x81]]
    %v978 = vstv %s977
    %v979 = vmul.f32 %v978, %v888
    %981 = vrot.lane.b32.xlu0 %v979, 126
    %v982 = vpop.permute.xlu0 %981
    %v984 = vadd.f32 %v936, %v982
    %s985 = sld [smem:[#allocation2 + $0x8a]]
    %v986 = vstv %s985
    %v987 = vmul.f32 %v986, %v888
    %989 = vrot.lane.b32.xlu0 %v987, 126
    %v990 = vpop.permute.xlu0 %989
    %v992 = vadd.f32 %v944, %v990
    %s993 = sld [smem:[#allocation2 + $0x93]]
    %v994 = vstv %s993
    %v995 = vmul.f32 %v994, %v888
    %997 = vrot.lane.b32.xlu0 %v995, 126
    %v998 = vpop.permute.xlu0 %997
    %v1000 = vadd.f32 %v952, %v998
    %s1001 = sld [smem:[#allocation2 + $0x9c]]
    %v1002 = vstv %s1001
    %v1003 = vmul.f32 %v1002, %v888
    %1005 = vrot.lane.b32.xlu0 %v1003, 126
    %v1006 = vpop.permute.xlu0 %1005
    %v1008 = vadd.f32 %v960, %v1006
    %v1009 = vld [vmem:[%s766 + $0xe] sm:$0x3f]
    %s1010 = sld [smem:[#allocation2 + $0x6e]]
    %v1011 = vstv %s1010
    %v1012 = vmul.f32 %v1011, %v1009
    %v1013 = vadd.f32 %v968, %v1012
    %s1014 = sld [smem:[#allocation2 + $0x77]]
    %v1015 = vstv %s1014
    %v1016 = vmul.f32 %v1015, %v1009
    %v1017 = vadd.f32 %v976, %v1016
    %s1018 = sld [smem:[#allocation2 + $0x80]]
    %v1019 = vstv %s1018
    %v1020 = vmul.f32 %v1019, %v1009
    %v1021 = vadd.f32 %v984, %v1020
    %s1022 = sld [smem:[#allocation2 + $0x89]]
    %v1023 = vstv %s1022
    %v1024 = vmul.f32 %v1023, %v1009
    %v1025 = vadd.f32 %v992, %v1024
    %s1026 = sld [smem:[#allocation2 + $0x92]]
    %v1027 = vstv %s1026
    %v1028 = vmul.f32 %v1027, %v1009
    %v1029 = vadd.f32 %v1000, %v1028
    %s1030 = sld [smem:[#allocation2 + $0x9b]]
    %v1031 = vstv %s1030
    %v1032 = vmul.f32 %v1031, %v1009
    %v1033 = vadd.f32 %v1008, %v1032
    %s1034 = sld [smem:[#allocation2 + $0x6d]]
    %v1035 = vstv %s1034
    %v1036 = vmul.f32 %v1035, %v1009
    %1038 = vrot.lane.b32.xlu0 %v1036, 127
    %v1039 = vpop.permute.xlu0 %1038
    %v1041 = vadd.f32 %v1013, %v1039
    %s1042 = sld [smem:[#allocation2 + $0x76]]
    %v1043 = vstv %s1042
    %v1044 = vmul.f32 %v1043, %v1009
    %1046 = vrot.lane.b32.xlu0 %v1044, 127
    %v1047 = vpop.permute.xlu0 %1046
    %v1049 = vadd.f32 %v1017, %v1047
    %s1050 = sld [smem:[#allocation2 + $0x7f]]
    %v1051 = vstv %s1050
    %v1052 = vmul.f32 %v1051, %v1009
    %1054 = vrot.lane.b32.xlu0 %v1052, 127
    %v1055 = vpop.permute.xlu0 %1054
    %v1057 = vadd.f32 %v1021, %v1055
    %s1058 = sld [smem:[#allocation2 + $0x88]]
    %v1059 = vstv %s1058
    %v1060 = vmul.f32 %v1059, %v1009
    %1062 = vrot.lane.b32.xlu0 %v1060, 127
    %v1063 = vpop.permute.xlu0 %1062
    %v1065 = vadd.f32 %v1025, %v1063
    %s1066 = sld [smem:[#allocation2 + $0x91]]
    %v1067 = vstv %s1066
    %v1068 = vmul.f32 %v1067, %v1009
    %1070 = vrot.lane.b32.xlu0 %v1068, 127
    %v1071 = vpop.permute.xlu0 %1070
    %v1073 = vadd.f32 %v1029, %v1071
    %s1074 = sld [smem:[#allocation2 + $0x9a]]
    %v1075 = vstv %s1074
    %v1076 = vmul.f32 %v1075, %v1009
    %1078 = vrot.lane.b32.xlu0 %v1076, 127
    %v1079 = vpop.permute.xlu0 %1078
    %v1081 = vadd.f32 %v1033, %v1079
    %s1082 = sld [smem:[#allocation2 + $0x6c]]
    %v1083 = vstv %s1082
    %v1084 = vmul.f32 %v1083, %v1009
    %1086 = vrot.lane.b32.xlu0 %v1084, 126
    %v1087 = vpop.permute.xlu0 %1086
    %v1089 = vadd.f32 %v1041, %v1087
    %s1090 = sld [smem:[#allocation2 + $0x75]]
    %v1091 = vstv %s1090
    %v1092 = vmul.f32 %v1091, %v1009
    %1094 = vrot.lane.b32.xlu0 %v1092, 126
    %v1095 = vpop.permute.xlu0 %1094
    %v1097 = vadd.f32 %v1049, %v1095
    %s1098 = sld [smem:[#allocation2 + $0x7e]]
    %v1099 = vstv %s1098
    %v1100 = vmul.f32 %v1099, %v1009
    %1102 = vrot.lane.b32.xlu0 %v1100, 126
    %v1103 = vpop.permute.xlu0 %1102
    %v1105 = vadd.f32 %v1057, %v1103
    %s1106 = sld [smem:[#allocation2 + $0x87]]
    %v1107 = vstv %s1106
    %v1108 = vmul.f32 %v1107, %v1009
    %1110 = vrot.lane.b32.xlu0 %v1108, 126
    %v1111 = vpop.permute.xlu0 %1110
    %v1113 = vadd.f32 %v1065, %v1111
    %s1114 = sld [smem:[#allocation2 + $0x90]]
    %v1115 = vstv %s1114
    %v1116 = vmul.f32 %v1115, %v1009
    %1118 = vrot.lane.b32.xlu0 %v1116, 126
    %v1119 = vpop.permute.xlu0 %1118
    %v1121 = vadd.f32 %v1073, %v1119
    %s1122 = sld [smem:[#allocation2 + $0x99]]
    %v1123 = vstv %s1122
    %v1124 = vmul.f32 %v1123, %v1009
    %1126 = vrot.lane.b32.xlu0 %v1124, 126
    %v1127 = vpop.permute.xlu0 %1126
    %v1129 = vadd.f32 %v1081, %v1127
    %v1130 = vlaneseq
    %v1131 = vshrl.u32 %v1130, 7
    %v1132 = vadd.s32 %v1131, 8
    %v1133 = vlaneseq
    %v1134 = vand.u32 %v1133, 127
    %v1135 = vmul.u32 %v1134, 2
    %vm1136 = vcmp.eq.s32.totalorder %v1131, %v1135
    %vm1137 = vcmp.eq.s32.totalorder %v1132, %v1135
    %v1138 = vsel %vm1136, 1.0, 0.0
    %v1139 = vsel %vm1137, 1.0, 0.0
    %v1140 = vmul.u32 %v1131, 2
    %v1141 = vadd.s32 %v1140, 1
    %vm1142 = vcmp.eq.s32.totalorder %v1134, %v1141
    %v1143 = vsel %vm1142, 1.0, 0.0
    %1145 = vrot.lane.b32.xlu0 %v1089, 115
    %v1146 = vpop.permute.xlu0 %1145
    %vm1147 = vcmask 31744
    %v1148 = vsel %vm1147, %v1146, 0
    %vm1150 = vcmask 1043456
    %v1152 = vsel %vm1150, %v1143, 0
    %1154 = vmatprep.subr.mxu0 0.0
    %1155 = vmatpush1.msra.mxu0 0.0
    %1156 = vmatprep.subr.mxu0 0.0
    %1157 = vmatpush1.msra.mxu0 0.0
    %1158 = vmatprep.subr.mxu0 0.0
    %1159 = vmatpush1.msra.mxu0 0.0
    %1160 = vmatprep.subr.mxu0 0.0
    %1161 = vmatpush1.msra.mxu0 0.0
    %1162 = vmatprep.subr.mxu0 0.0
    %1163 = vmatpush1.msra.mxu0 0.0
    %1164 = vmatprep.subr.mxu0 0.0
    %1165 = vmatpush1.msra.mxu0 0.0
    %1166 = vmatprep.subr.mxu0 0.0
    %1167 = vmatpush1.msra.mxu0 0.0
    %1168 = vmatprep.subr.mxu0 0.0
    %1169 = vmatpush1.msra.mxu0 0.0
    %1170 = vmatprep.subr.mxu0 0.0
    %1171 = vmatpush1.msra.mxu0 0.0
    %1172 = vmatprep.subr.mxu0 0.0
    %1173 = vmatpush1.msra.mxu0 0.0
    %1174 = vmatprep.subr.mxu0 0.0
    %1175 = vmatpush1.msra.mxu0 0.0
    %1176 = vmatprep.subr.mxu0 0.0
    %1177 = vmatpush1.msra.mxu0 0.0
    %1178 = vmatprep.subr.mxu0 0.0
    %1179 = vmatpush1.msra.mxu0 0.0
    %1180 = vmatprep.subr.mxu0 0.0
    %1181 = vmatpush1.msra.mxu0 0.0
    %1182 = vmatprep.subr.mxu0 0.0
    %1183 = vmatpush1.msra.mxu0 0.0
    %1184 = vmatprep.subr.mxu0 0.0
    %1185 = vmatpush1.msra.mxu0 %v1152
    %1186 = vmatprep.subr.mxu0 0.0
    %1187 = vmatpush2.msra.mxu0 0.0
    %1188 = vmatprep.subr.mxu0 0.0
    %1189 = vmatpush2.msra.mxu0 0.0
    %1190 = vmatprep.subr.mxu0 0.0
    %1191 = vmatpush2.msra.mxu0 0.0
    %1192 = vmatprep.subr.mxu0 0.0
    %1193 = vmatpush2.msra.mxu0 0.0
    %1194 = vmatprep.subr.mxu0 0.0
    %1195 = vmatpush2.msra.mxu0 0.0
    %1196 = vmatprep.subr.mxu0 0.0
    %1197 = vmatpush2.msra.mxu0 0.0
    %1198 = vmatprep.subr.mxu0 0.0
    %1199 = vmatpush2.msra.mxu0 0.0
    %1200 = vmatprep.subr.mxu0 0.0
    %1201 = vmatpush2.msra.mxu0 0.0
    %1202 = vmatprep.subr.mxu0 0.0
    %1203 = vmatpush2.msra.mxu0 0.0
    %1204 = vmatprep.subr.mxu0 0.0
    %1205 = vmatpush2.msra.mxu0 0.0
    %1206 = vmatprep.subr.mxu0 0.0
    %1207 = vmatpush2.msra.mxu0 0.0
    %1208 = vmatprep.subr.mxu0 0.0
    %1209 = vmatpush2.msra.mxu0 0.0
    %1210 = vmatprep.subr.mxu0 0.0
    %1211 = vmatpush2.msra.mxu0 0.0
    %1212 = vmatprep.subr.mxu0 0.0
    %1213 = vmatpush2.msra.mxu0 0.0
    %1214 = vmatprep.subr.mxu0 0.0
    %1215 = vmatpush2.msra.mxu0 0.0
    %1216 = vmatprep.subr.mxu0 0.0
    %1217 = vmatpush2.msra.mxu0 0.0
    %1218 = vmatprep.mubr.f32.mxu0 0.0
    %1219 = vmatmul.mubr.f32.gmra.mxu0 %v1148
    %v1220 = vpop.f32.mrf.mxu0
    %v1221 = vadd.f32 0.0, %v1220
    %v1222 = vpop.f32.mrf.mxu0
    %1223 = vdwg.mxu0
    %s1224 = sld [smem:[#allocation4]]
    %v1225 = vstv %s1224
    %vm1226 = vcmask 48128
    %v1228 = vsel %vm1226, %v1138, 0
    %v1231 = vsel %vm1226, %v1139, 0
    %vm1233 = vcmask 1045504
    %v1235 = vsel %vm1233, %v1221, 0
    %1237 = vmatprep.subr.mxu0 0.0
    %1238 = vmatpush1.msra.mxu0 0.0
    %1239 = vmatprep.subr.mxu0 0.0
    %1240 = vmatpush1.msra.mxu0 0.0
    %1241 = vmatprep.subr.mxu0 0.0
    %1242 = vmatpush1.msra.mxu0 0.0
    %1243 = vmatprep.subr.mxu0 0.0
    %1244 = vmatpush1.msra.mxu0 0.0
    %1245 = vmatprep.subr.mxu0 0.0
    %1246 = vmatpush1.msra.mxu0 0.0
    %1247 = vmatprep.subr.mxu0 0.0
    %1248 = vmatpush1.msra.mxu0 0.0
    %1249 = vmatprep.subr.mxu0 0.0
    %1250 = vmatpush1.msra.mxu0 0.0
    %1251 = vmatprep.subr.mxu0 0.0
    %1252 = vmatpush1.msra.mxu0 0.0
    %1253 = vmatprep.subr.mxu0 0.0
    %1254 = vmatpush1.msra.mxu0 0.0
    %1255 = vmatprep.subr.mxu0 0.0
    %1256 = vmatpush1.msra.mxu0 0.0
    %1257 = vmatprep.subr.mxu0 0.0
    %1258 = vmatpush1.msra.mxu0 0.0
    %1259 = vmatprep.subr.mxu0 0.0
    %1260 = vmatpush1.msra.mxu0 0.0
    %1261 = vmatprep.subr.mxu0 0.0
    %1262 = vmatpush1.msra.mxu0 0.0
    %1263 = vmatprep.subr.mxu0 0.0
    %1264 = vmatpush1.msra.mxu0 0.0
    %1265 = vmatprep.subr.mxu0 0.0
    %1266 = vmatpush1.msra.mxu0 0.0
    %1267 = vmatprep.subr.mxu0 0.0
    %1268 = vmatpush1.msra.mxu0 %v1235
    %1269 = vmatprep.subr.mxu0 0.0
    %1270 = vmatpush2.msra.mxu0 0.0
    %1271 = vmatprep.subr.mxu0 0.0
    %1272 = vmatpush2.msra.mxu0 0.0
    %1273 = vmatprep.subr.mxu0 0.0
    %1274 = vmatpush2.msra.mxu0 0.0
    %1275 = vmatprep.subr.mxu0 0.0
    %1276 = vmatpush2.msra.mxu0 0.0
    %1277 = vmatprep.subr.mxu0 0.0
    %1278 = vmatpush2.msra.mxu0 0.0
    %1279 = vmatprep.subr.mxu0 0.0
    %1280 = vmatpush2.msra.mxu0 0.0
    %1281 = vmatprep.subr.mxu0 0.0
    %1282 = vmatpush2.msra.mxu0 0.0
    %1283 = vmatprep.subr.mxu0 0.0
    %1284 = vmatpush2.msra.mxu0 0.0
    %1285 = vmatprep.subr.mxu0 0.0
    %1286 = vmatpush2.msra.mxu0 0.0
    %1287 = vmatprep.subr.mxu0 0.0
    %1288 = vmatpush2.msra.mxu0 0.0
    %1289 = vmatprep.subr.mxu0 0.0
    %1290 = vmatpush2.msra.mxu0 0.0
    %1291 = vmatprep.subr.mxu0 0.0
    %1292 = vmatpush2.msra.mxu0 0.0
    %1293 = vmatprep.subr.mxu0 0.0
    %1294 = vmatpush2.msra.mxu0 0.0
    %1295 = vmatprep.subr.mxu0 0.0
    %1296 = vmatpush2.msra.mxu0 0.0
    %1297 = vmatprep.subr.mxu0 0.0
    %1298 = vmatpush2.msra.mxu0 0.0
    %1299 = vmatprep.subr.mxu0 0.0
    %1300 = vmatpush2.msra.mxu0 0.0
    %1301 = vmatprep.mubr.f32.mxu0 0.0
    %1302 = vmatmul.mubr.f32.gmra.mxu0 %v1228
    %v1303 = vpop.f32.mrf.mxu0
    %v1304 = vadd.f32 %v1225, %v1303
    %v1305 = vpop.f32.mrf.mxu0
    %1306 = vmatprep.mubr.f32.mxu0 0.0
    %1307 = vmatmul.mubr.f32.gmra.mxu0 %v1231
    %v1308 = vpop.f32.mrf.mxu0
    %v1309 = vadd.f32 %v1225, %v1308
    %v1310 = vpop.f32.mrf.mxu0
    %1311 = vdwg.mxu0
    %v1312 = vtanh.pop %v1304
    %v1313 = vtanh.pop %v1309
    %1314 = vst [vmem:[%s3] sm:$0xff] %v1312
    %1315 = vst [vmem:[%s3 + $0x8] sm:$0x7] %v1313
    %1317 = vrot.lane.b32.xlu0 %v1097, 115
    %v1318 = vpop.permute.xlu0 %1317
    %v1319 = vsel %vm1147, %v1318, 0
    %1321 = vmatprep.subr.mxu0 0.0
    %1322 = vmatpush1.msra.mxu0 0.0
    %1323 = vmatprep.subr.mxu0 0.0
    %1324 = vmatpush1.msra.mxu0 0.0
    %1325 = vmatprep.subr.mxu0 0.0
    %1326 = vmatpush1.msra.mxu0 0.0
    %1327 = vmatprep.subr.mxu0 0.0
    %1328 = vmatpush1.msra.mxu0 0.0
    %1329 = vmatprep.subr.mxu0 0.0
    %1330 = vmatpush1.msra.mxu0 0.0
    %1331 = vmatprep.subr.mxu0 0.0
    %1332 = vmatpush1.msra.mxu0 0.0
    %1333 = vmatprep.subr.mxu0 0.0
    %1334 = vmatpush1.msra.mxu0 0.0
    %1335 = vmatprep.subr.mxu0 0.0
    %1336 = vmatpush1.msra.mxu0 0.0
    %1337 = vmatprep.subr.mxu0 0.0
    %1338 = vmatpush1.msra.mxu0 0.0
    %1339 = vmatprep.subr.mxu0 0.0
    %1340 = vmatpush1.msra.mxu0 0.0
    %1341 = vmatprep.subr.mxu0 0.0
    %1342 = vmatpush1.msra.mxu0 0.0
    %1343 = vmatprep.subr.mxu0 0.0
    %1344 = vmatpush1.msra.mxu0 0.0
    %1345 = vmatprep.subr.mxu0 0.0
    %1346 = vmatpush1.msra.mxu0 0.0
    %1347 = vmatprep.subr.mxu0 0.0
    %1348 = vmatpush1.msra.mxu0 0.0
    %1349 = vmatprep.subr.mxu0 0.0
    %1350 = vmatpush1.msra.mxu0 0.0
    %1351 = vmatprep.subr.mxu0 0.0
    %1352 = vmatpush1.msra.mxu0 %v1152
    %1353 = vmatprep.subr.mxu0 0.0
    %1354 = vmatpush2.msra.mxu0 0.0
    %1355 = vmatprep.subr.mxu0 0.0
    %1356 = vmatpush2.msra.mxu0 0.0
    %1357 = vmatprep.subr.mxu0 0.0
    %1358 = vmatpush2.msra.mxu0 0.0
    %1359 = vmatprep.subr.mxu0 0.0
    %1360 = vmatpush2.msra.mxu0 0.0
    %1361 = vmatprep.subr.mxu0 0.0
    %1362 = vmatpush2.msra.mxu0 0.0
    %1363 = vmatprep.subr.mxu0 0.0
    %1364 = vmatpush2.msra.mxu0 0.0
    %1365 = vmatprep.subr.mxu0 0.0
    %1366 = vmatpush2.msra.mxu0 0.0
    %1367 = vmatprep.subr.mxu0 0.0
    %1368 = vmatpush2.msra.mxu0 0.0
    %1369 = vmatprep.subr.mxu0 0.0
    %1370 = vmatpush2.msra.mxu0 0.0
    %1371 = vmatprep.subr.mxu0 0.0
    %1372 = vmatpush2.msra.mxu0 0.0
    %1373 = vmatprep.subr.mxu0 0.0
    %1374 = vmatpush2.msra.mxu0 0.0
    %1375 = vmatprep.subr.mxu0 0.0
    %1376 = vmatpush2.msra.mxu0 0.0
    %1377 = vmatprep.subr.mxu0 0.0
    %1378 = vmatpush2.msra.mxu0 0.0
    %1379 = vmatprep.subr.mxu0 0.0
    %1380 = vmatpush2.msra.mxu0 0.0
    %1381 = vmatprep.subr.mxu0 0.0
    %1382 = vmatpush2.msra.mxu0 0.0
    %1383 = vmatprep.subr.mxu0 0.0
    %1384 = vmatpush2.msra.mxu0 0.0
    %1385 = vmatprep.mubr.f32.mxu0 0.0
    %1386 = vmatmul.mubr.f32.gmra.mxu0 %v1319
    %v1387 = vpop.f32.mrf.mxu0
    %v1388 = vadd.f32 0.0, %v1387
    %v1389 = vpop.f32.mrf.mxu0
    %1390 = vdwg.mxu0
    %s1391 = sld [smem:[#allocation4 + $0x1]]
    %v1392 = vstv %s1391
    %v1394 = vsel %vm1233, %v1388, 0
    %1396 = vmatprep.subr.mxu0 0.0
    %1397 = vmatpush1.msra.mxu0 0.0
    %1398 = vmatprep.subr.mxu0 0.0
    %1399 = vmatpush1.msra.mxu0 0.0
    %1400 = vmatprep.subr.mxu0 0.0
    %1401 = vmatpush1.msra.mxu0 0.0
    %1402 = vmatprep.subr.mxu0 0.0
    %1403 = vmatpush1.msra.mxu0 0.0
    %1404 = vmatprep.subr.mxu0 0.0
    %1405 = vmatpush1.msra.mxu0 0.0
    %1406 = vmatprep.subr.mxu0 0.0
    %1407 = vmatpush1.msra.mxu0 0.0
    %1408 = vmatprep.subr.mxu0 0.0
    %1409 = vmatpush1.msra.mxu0 0.0
    %1410 = vmatprep.subr.mxu0 0.0
    %1411 = vmatpush1.msra.mxu0 0.0
    %1412 = vmatprep.subr.mxu0 0.0
    %1413 = vmatpush1.msra.mxu0 0.0
    %1414 = vmatprep.subr.mxu0 0.0
    %1415 = vmatpush1.msra.mxu0 0.0
    %1416 = vmatprep.subr.mxu0 0.0
    %1417 = vmatpush1.msra.mxu0 0.0
    %1418 = vmatprep.subr.mxu0 0.0
    %1419 = vmatpush1.msra.mxu0 0.0
    %1420 = vmatprep.subr.mxu0 0.0
    %1421 = vmatpush1.msra.mxu0 0.0
    %1422 = vmatprep.subr.mxu0 0.0
    %1423 = vmatpush1.msra.mxu0 0.0
    %1424 = vmatprep.subr.mxu0 0.0
    %1425 = vmatpush1.msra.mxu0 0.0
    %1426 = vmatprep.subr.mxu0 0.0
    %1427 = vmatpush1.msra.mxu0 %v1394
    %1428 = vmatprep.subr.mxu0 0.0
    %1429 = vmatpush2.msra.mxu0 0.0
    %1430 = vmatprep.subr.mxu0 0.0
    %1431 = vmatpush2.msra.mxu0 0.0
    %1432 = vmatprep.subr.mxu0 0.0
    %1433 = vmatpush2.msra.mxu0 0.0
    %1434 = vmatprep.subr.mxu0 0.0
    %1435 = vmatpush2.msra.mxu0 0.0
    %1436 = vmatprep.subr.mxu0 0.0
    %1437 = vmatpush2.msra.mxu0 0.0
    %1438 = vmatprep.subr.mxu0 0.0
    %1439 = vmatpush2.msra.mxu0 0.0
    %1440 = vmatprep.subr.mxu0 0.0
    %1441 = vmatpush2.msra.mxu0 0.0
    %1442 = vmatprep.subr.mxu0 0.0
    %1443 = vmatpush2.msra.mxu0 0.0
    %1444 = vmatprep.subr.mxu0 0.0
    %1445 = vmatpush2.msra.mxu0 0.0
    %1446 = vmatprep.subr.mxu0 0.0
    %1447 = vmatpush2.msra.mxu0 0.0
    %1448 = vmatprep.subr.mxu0 0.0
    %1449 = vmatpush2.msra.mxu0 0.0
    %1450 = vmatprep.subr.mxu0 0.0
    %1451 = vmatpush2.msra.mxu0 0.0
    %1452 = vmatprep.subr.mxu0 0.0
    %1453 = vmatpush2.msra.mxu0 0.0
    %1454 = vmatprep.subr.mxu0 0.0
    %1455 = vmatpush2.msra.mxu0 0.0
    %1456 = vmatprep.subr.mxu0 0.0
    %1457 = vmatpush2.msra.mxu0 0.0
    %1458 = vmatprep.subr.mxu0 0.0
    %1459 = vmatpush2.msra.mxu0 0.0
    %1460 = vmatprep.mubr.f32.mxu0 0.0
    %1461 = vmatmul.mubr.f32.gmra.mxu0 %v1228
    %v1462 = vpop.f32.mrf.mxu0
    %v1463 = vadd.f32 %v1392, %v1462
    %v1464 = vpop.f32.mrf.mxu0
    %1465 = vmatprep.mubr.f32.mxu0 0.0
    %1466 = vmatmul.mubr.f32.gmra.mxu0 %v1231
    %v1467 = vpop.f32.mrf.mxu0
    %v1468 = vadd.f32 %v1392, %v1467
    %v1469 = vpop.f32.mrf.mxu0
    %1470 = vdwg.mxu0
    %v1471 = vtanh.pop %v1463
    %v1472 = vtanh.pop %v1468
    %s1473 = scalar_lea.vmem %s3, 16
    %1474 = vst [vmem:[%s1473] sm:$0xff] %v1471
    %1475 = vst [vmem:[%s1473 + $0x8] sm:$0x7] %v1472
    %1477 = vrot.lane.b32.xlu0 %v1105, 115
    %v1478 = vpop.permute.xlu0 %1477
    %v1479 = vsel %vm1147, %v1478, 0
    %1481 = vmatprep.subr.mxu0 0.0
    %1482 = vmatpush1.msra.mxu0 0.0
    %1483 = vmatprep.subr.mxu0 0.0
    %1484 = vmatpush1.msra.mxu0 0.0
    %1485 = vmatprep.subr.mxu0 0.0
    %1486 = vmatpush1.msra.mxu0 0.0
    %1487 = vmatprep.subr.mxu0 0.0
    %1488 = vmatpush1.msra.mxu0 0.0
    %1489 = vmatprep.subr.mxu0 0.0
    %1490 = vmatpush1.msra.mxu0 0.0
    %1491 = vmatprep.subr.mxu0 0.0
    %1492 = vmatpush1.msra.mxu0 0.0
    %1493 = vmatprep.subr.mxu0 0.0
    %1494 = vmatpush1.msra.mxu0 0.0
    %1495 = vmatprep.subr.mxu0 0.0
    %1496 = vmatpush1.msra.mxu0 0.0
    %1497 = vmatprep.subr.mxu0 0.0
    %1498 = vmatpush1.msra.mxu0 0.0
    %1499 = vmatprep.subr.mxu0 0.0
    %1500 = vmatpush1.msra.mxu0 0.0
    %1501 = vmatprep.subr.mxu0 0.0
    %1502 = vmatpush1.msra.mxu0 0.0
    %1503 = vmatprep.subr.mxu0 0.0
    %1504 = vmatpush1.msra.mxu0 0.0
    %1505 = vmatprep.subr.mxu0 0.0
    %1506 = vmatpush1.msra.mxu0 0.0
    %1507 = vmatprep.subr.mxu0 0.0
    %1508 = vmatpush1.msra.mxu0 0.0
    %1509 = vmatprep.subr.mxu0 0.0
    %1510 = vmatpush1.msra.mxu0 0.0
    %1511 = vmatprep.subr.mxu0 0.0
    %1512 = vmatpush1.msra.mxu0 %v1152
    %1513 = vmatprep.subr.mxu0 0.0
    %1514 = vmatpush2.msra.mxu0 0.0
    %1515 = vmatprep.subr.mxu0 0.0
    %1516 = vmatpush2.msra.mxu0 0.0
    %1517 = vmatprep.subr.mxu0 0.0
    %1518 = vmatpush2.msra.mxu0 0.0
    %1519 = vmatprep.subr.mxu0 0.0
    %1520 = vmatpush2.msra.mxu0 0.0
    %1521 = vmatprep.subr.mxu0 0.0
    %1522 = vmatpush2.msra.mxu0 0.0
    %1523 = vmatprep.subr.mxu0 0.0
    %1524 = vmatpush2.msra.mxu0 0.0
    %1525 = vmatprep.subr.mxu0 0.0
    %1526 = vmatpush2.msra.mxu0 0.0
    %1527 = vmatprep.subr.mxu0 0.0
    %1528 = vmatpush2.msra.mxu0 0.0
    %1529 = vmatprep.subr.mxu0 0.0
    %1530 = vmatpush2.msra.mxu0 0.0
    %1531 = vmatprep.subr.mxu0 0.0
    %1532 = vmatpush2.msra.mxu0 0.0
    %1533 = vmatprep.subr.mxu0 0.0
    %1534 = vmatpush2.msra.mxu0 0.0
    %1535 = vmatprep.subr.mxu0 0.0
    %1536 = vmatpush2.msra.mxu0 0.0
    %1537 = vmatprep.subr.mxu0 0.0
    %1538 = vmatpush2.msra.mxu0 0.0
    %1539 = vmatprep.subr.mxu0 0.0
    %1540 = vmatpush2.msra.mxu0 0.0
    %1541 = vmatprep.subr.mxu0 0.0
    %1542 = vmatpush2.msra.mxu0 0.0
    %1543 = vmatprep.subr.mxu0 0.0
    %1544 = vmatpush2.msra.mxu0 0.0
    %1545 = vmatprep.mubr.f32.mxu0 0.0
    %1546 = vmatmul.mubr.f32.gmra.mxu0 %v1479
    %v1547 = vpop.f32.mrf.mxu0
    %v1548 = vadd.f32 0.0, %v1547
    %v1549 = vpop.f32.mrf.mxu0
    %1550 = vdwg.mxu0
    %s1551 = sld [smem:[#allocation4 + $0x2]]
    %v1552 = vstv %s1551
    %v1554 = vsel %vm1233, %v1548, 0
    %1556 = vmatprep.subr.mxu0 0.0
    %1557 = vmatpush1.msra.mxu0 0.0
    %1558 = vmatprep.subr.mxu0 0.0
    %1559 = vmatpush1.msra.mxu0 0.0
    %1560 = vmatprep.subr.mxu0 0.0
    %1561 = vmatpush1.msra.mxu0 0.0
    %1562 = vmatprep.subr.mxu0 0.0
    %1563 = vmatpush1.msra.mxu0 0.0
    %1564 = vmatprep.subr.mxu0 0.0
    %1565 = vmatpush1.msra.mxu0 0.0
    %1566 = vmatprep.subr.mxu0 0.0
    %1567 = vmatpush1.msra.mxu0 0.0
    %1568 = vmatprep.subr.mxu0 0.0
    %1569 = vmatpush1.msra.mxu0 0.0
    %1570 = vmatprep.subr.mxu0 0.0
    %1571 = vmatpush1.msra.mxu0 0.0
    %1572 = vmatprep.subr.mxu0 0.0
    %1573 = vmatpush1.msra.mxu0 0.0
    %1574 = vmatprep.subr.mxu0 0.0
    %1575 = vmatpush1.msra.mxu0 0.0
    %1576 = vmatprep.subr.mxu0 0.0
    %1577 = vmatpush1.msra.mxu0 0.0
    %1578 = vmatprep.subr.mxu0 0.0
    %1579 = vmatpush1.msra.mxu0 0.0
    %1580 = vmatprep.subr.mxu0 0.0
    %1581 = vmatpush1.msra.mxu0 0.0
    %1582 = vmatprep.subr.mxu0 0.0
    %1583 = vmatpush1.msra.mxu0 0.0
    %1584 = vmatprep.subr.mxu0 0.0
    %1585 = vmatpush1.msra.mxu0 0.0
    %1586 = vmatprep.subr.mxu0 0.0
    %1587 = vmatpush1.msra.mxu0 %v1554
    %1588 = vmatprep.subr.mxu0 0.0
    %1589 = vmatpush2.msra.mxu0 0.0
    %1590 = vmatprep.subr.mxu0 0.0
    %1591 = vmatpush2.msra.mxu0 0.0
    %1592 = vmatprep.subr.mxu0 0.0
    %1593 = vmatpush2.msra.mxu0 0.0
    %1594 = vmatprep.subr.mxu0 0.0
    %1595 = vmatpush2.msra.mxu0 0.0
    %1596 = vmatprep.subr.mxu0 0.0
    %1597 = vmatpush2.msra.mxu0 0.0
    %1598 = vmatprep.subr.mxu0 0.0
    %1599 = vmatpush2.msra.mxu0 0.0
    %1600 = vmatprep.subr.mxu0 0.0
    %1601 = vmatpush2.msra.mxu0 0.0
    %1602 = vmatprep.subr.mxu0 0.0
    %1603 = vmatpush2.msra.mxu0 0.0
    %1604 = vmatprep.subr.mxu0 0.0
    %1605 = vmatpush2.msra.mxu0 0.0
    %1606 = vmatprep.subr.mxu0 0.0
    %1607 = vmatpush2.msra.mxu0 0.0
    %1608 = vmatprep.subr.mxu0 0.0
    %1609 = vmatpush2.msra.mxu0 0.0
    %1610 = vmatprep.subr.mxu0 0.0
    %1611 = vmatpush2.msra.mxu0 0.0
    %1612 = vmatprep.subr.mxu0 0.0
    %1613 = vmatpush2.msra.mxu0 0.0
    %1614 = vmatprep.subr.mxu0 0.0
    %1615 = vmatpush2.msra.mxu0 0.0
    %1616 = vmatprep.subr.mxu0 0.0
    %1617 = vmatpush2.msra.mxu0 0.0
    %1618 = vmatprep.subr.mxu0 0.0
    %1619 = vmatpush2.msra.mxu0 0.0
    %1620 = vmatprep.mubr.f32.mxu0 0.0
    %1621 = vmatmul.mubr.f32.gmra.mxu0 %v1228
    %v1622 = vpop.f32.mrf.mxu0
    %v1623 = vadd.f32 %v1552, %v1622
    %v1624 = vpop.f32.mrf.mxu0
    %1625 = vmatprep.mubr.f32.mxu0 0.0
    %1626 = vmatmul.mubr.f32.gmra.mxu0 %v1231
    %v1627 = vpop.f32.mrf.mxu0
    %v1628 = vadd.f32 %v1552, %v1627
    %v1629 = vpop.f32.mrf.mxu0
    %1630 = vdwg.mxu0
    %v1631 = vtanh.pop %v1623
    %v1632 = vtanh.pop %v1628
    %s1633 = scalar_lea.vmem %s3, 32
    %1634 = vst [vmem:[%s1633] sm:$0xff] %v1631
    %1635 = vst [vmem:[%s1633 + $0x8] sm:$0x7] %v1632
    %1637 = vrot.lane.b32.xlu0 %v1113, 115
    %v1638 = vpop.permute.xlu0 %1637
    %v1639 = vsel %vm1147, %v1638, 0
    %1641 = vmatprep.subr.mxu0 0.0
    %1642 = vmatpush1.msra.mxu0 0.0
    %1643 = vmatprep.subr.mxu0 0.0
    %1644 = vmatpush1.msra.mxu0 0.0
    %1645 = vmatprep.subr.mxu0 0.0
    %1646 = vmatpush1.msra.mxu0 0.0
    %1647 = vmatprep.subr.mxu0 0.0
    %1648 = vmatpush1.msra.mxu0 0.0
    %1649 = vmatprep.subr.mxu0 0.0
    %1650 = vmatpush1.msra.mxu0 0.0
    %1651 = vmatprep.subr.mxu0 0.0
    %1652 = vmatpush1.msra.mxu0 0.0
    %1653 = vmatprep.subr.mxu0 0.0
    %1654 = vmatpush1.msra.mxu0 0.0
    %1655 = vmatprep.subr.mxu0 0.0
    %1656 = vmatpush1.msra.mxu0 0.0
    %1657 = vmatprep.subr.mxu0 0.0
    %1658 = vmatpush1.msra.mxu0 0.0
    %1659 = vmatprep.subr.mxu0 0.0
    %1660 = vmatpush1.msra.mxu0 0.0
    %1661 = vmatprep.subr.mxu0 0.0
    %1662 = vmatpush1.msra.mxu0 0.0
    %1663 = vmatprep.subr.mxu0 0.0
    %1664 = vmatpush1.msra.mxu0 0.0
    %1665 = vmatprep.subr.mxu0 0.0
    %1666 = vmatpush1.msra.mxu0 0.0
    %1667 = vmatprep.subr.mxu0 0.0
    %1668 = vmatpush1.msra.mxu0 0.0
    %1669 = vmatprep.subr.mxu0 0.0
    %1670 = vmatpush1.msra.mxu0 0.0
    %1671 = vmatprep.subr.mxu0 0.0
    %1672 = vmatpush1.msra.mxu0 %v1152
    %1673 = vmatprep.subr.mxu0 0.0
    %1674 = vmatpush2.msra.mxu0 0.0
    %1675 = vmatprep.subr.mxu0 0.0
    %1676 = vmatpush2.msra.mxu0 0.0
    %1677 = vmatprep.subr.mxu0 0.0
    %1678 = vmatpush2.msra.mxu0 0.0
    %1679 = vmatprep.subr.mxu0 0.0
    %1680 = vmatpush2.msra.mxu0 0.0
    %1681 = vmatprep.subr.mxu0 0.0
    %1682 = vmatpush2.msra.mxu0 0.0
    %1683 = vmatprep.subr.mxu0 0.0
    %1684 = vmatpush2.msra.mxu0 0.0
    %1685 = vmatprep.subr.mxu0 0.0
    %1686 = vmatpush2.msra.mxu0 0.0
    %1687 = vmatprep.subr.mxu0 0.0
    %1688 = vmatpush2.msra.mxu0 0.0
    %1689 = vmatprep.subr.mxu0 0.0
    %1690 = vmatpush2.msra.mxu0 0.0
    %1691 = vmatprep.subr.mxu0 0.0
    %1692 = vmatpush2.msra.mxu0 0.0
    %1693 = vmatprep.subr.mxu0 0.0
    %1694 = vmatpush2.msra.mxu0 0.0
    %1695 = vmatprep.subr.mxu0 0.0
    %1696 = vmatpush2.msra.mxu0 0.0
    %1697 = vmatprep.subr.mxu0 0.0
    %1698 = vmatpush2.msra.mxu0 0.0
    %1699 = vmatprep.subr.mxu0 0.0
    %1700 = vmatpush2.msra.mxu0 0.0
    %1701 = vmatprep.subr.mxu0 0.0
    %1702 = vmatpush2.msra.mxu0 0.0
    %1703 = vmatprep.subr.mxu0 0.0
    %1704 = vmatpush2.msra.mxu0 0.0
    %1705 = vmatprep.mubr.f32.mxu0 0.0
    %1706 = vmatmul.mubr.f32.gmra.mxu0 %v1639
    %v1707 = vpop.f32.mrf.mxu0
    %v1708 = vadd.f32 0.0, %v1707
    %v1709 = vpop.f32.mrf.mxu0
    %1710 = vdwg.mxu0
    %s1711 = sld [smem:[#allocation4 + $0x3]]
    %v1712 = vstv %s1711
    %v1714 = vsel %vm1233, %v1708, 0
    %1716 = vmatprep.subr.mxu0 0.0
    %1717 = vmatpush1.msra.mxu0 0.0
    %1718 = vmatprep.subr.mxu0 0.0
    %1719 = vmatpush1.msra.mxu0 0.0
    %1720 = vmatprep.subr.mxu0 0.0
    %1721 = vmatpush1.msra.mxu0 0.0
    %1722 = vmatprep.subr.mxu0 0.0
    %1723 = vmatpush1.msra.mxu0 0.0
    %1724 = vmatprep.subr.mxu0 0.0
    %1725 = vmatpush1.msra.mxu0 0.0
    %1726 = vmatprep.subr.mxu0 0.0
    %1727 = vmatpush1.msra.mxu0 0.0
    %1728 = vmatprep.subr.mxu0 0.0
    %1729 = vmatpush1.msra.mxu0 0.0
    %1730 = vmatprep.subr.mxu0 0.0
    %1731 = vmatpush1.msra.mxu0 0.0
    %1732 = vmatprep.subr.mxu0 0.0
    %1733 = vmatpush1.msra.mxu0 0.0
    %1734 = vmatprep.subr.mxu0 0.0
    %1735 = vmatpush1.msra.mxu0 0.0
    %1736 = vmatprep.subr.mxu0 0.0
    %1737 = vmatpush1.msra.mxu0 0.0
    %1738 = vmatprep.subr.mxu0 0.0
    %1739 = vmatpush1.msra.mxu0 0.0
    %1740 = vmatprep.subr.mxu0 0.0
    %1741 = vmatpush1.msra.mxu0 0.0
    %1742 = vmatprep.subr.mxu0 0.0
    %1743 = vmatpush1.msra.mxu0 0.0
    %1744 = vmatprep.subr.mxu0 0.0
    %1745 = vmatpush1.msra.mxu0 0.0
    %1746 = vmatprep.subr.mxu0 0.0
    %1747 = vmatpush1.msra.mxu0 %v1714
    %1748 = vmatprep.subr.mxu0 0.0
    %1749 = vmatpush2.msra.mxu0 0.0
    %1750 = vmatprep.subr.mxu0 0.0
    %1751 = vmatpush2.msra.mxu0 0.0
    %1752 = vmatprep.subr.mxu0 0.0
    %1753 = vmatpush2.msra.mxu0 0.0
    %1754 = vmatprep.subr.mxu0 0.0
    %1755 = vmatpush2.msra.mxu0 0.0
    %1756 = vmatprep.subr.mxu0 0.0
    %1757 = vmatpush2.msra.mxu0 0.0
    %1758 = vmatprep.subr.mxu0 0.0
    %1759 = vmatpush2.msra.mxu0 0.0
    %1760 = vmatprep.subr.mxu0 0.0
    %1761 = vmatpush2.msra.mxu0 0.0
    %1762 = vmatprep.subr.mxu0 0.0
    %1763 = vmatpush2.msra.mxu0 0.0
    %1764 = vmatprep.subr.mxu0 0.0
    %1765 = vmatpush2.msra.mxu0 0.0
    %1766 = vmatprep.subr.mxu0 0.0
    %1767 = vmatpush2.msra.mxu0 0.0
    %1768 = vmatprep.subr.mxu0 0.0
    %1769 = vmatpush2.msra.mxu0 0.0
    %1770 = vmatprep.subr.mxu0 0.0
    %1771 = vmatpush2.msra.mxu0 0.0
    %1772 = vmatprep.subr.mxu0 0.0
    %1773 = vmatpush2.msra.mxu0 0.0
    %1774 = vmatprep.subr.mxu0 0.0
    %1775 = vmatpush2.msra.mxu0 0.0
    %1776 = vmatprep.subr.mxu0 0.0
    %1777 = vmatpush2.msra.mxu0 0.0
    %1778 = vmatprep.subr.mxu0 0.0
    %1779 = vmatpush2.msra.mxu0 0.0
    %1780 = vmatprep.mubr.f32.mxu0 0.0
    %1781 = vmatmul.mubr.f32.gmra.mxu0 %v1228
    %v1782 = vpop.f32.mrf.mxu0
    %v1783 = vadd.f32 %v1712, %v1782
    %v1784 = vpop.f32.mrf.mxu0
    %1785 = vmatprep.mubr.f32.mxu0 0.0
    %1786 = vmatmul.mubr.f32.gmra.mxu0 %v1231
    %v1787 = vpop.f32.mrf.mxu0
    %v1788 = vadd.f32 %v1712, %v1787
    %v1789 = vpop.f32.mrf.mxu0
    %1790 = vdwg.mxu0
    %v1791 = vtanh.pop %v1783
    %v1792 = vtanh.pop %v1788
    %s1793 = scalar_lea.vmem %s3, 48
    %1794 = vst [vmem:[%s1793] sm:$0xff] %v1791
    %1795 = vst [vmem:[%s1793 + $0x8] sm:$0x7] %v1792
    %1797 = vrot.lane.b32.xlu0 %v1121, 115
    %v1798 = vpop.permute.xlu0 %1797
    %v1799 = vsel %vm1147, %v1798, 0
    %1801 = vmatprep.subr.mxu0 0.0
    %1802 = vmatpush1.msra.mxu0 0.0
    %1803 = vmatprep.subr.mxu0 0.0
    %1804 = vmatpush1.msra.mxu0 0.0
    %1805 = vmatprep.subr.mxu0 0.0
    %1806 = vmatpush1.msra.mxu0 0.0
    %1807 = vmatprep.subr.mxu0 0.0
    %1808 = vmatpush1.msra.mxu0 0.0
    %1809 = vmatprep.subr.mxu0 0.0
    %1810 = vmatpush1.msra.mxu0 0.0
    %1811 = vmatprep.subr.mxu0 0.0
    %1812 = vmatpush1.msra.mxu0 0.0
    %1813 = vmatprep.subr.mxu0 0.0
    %1814 = vmatpush1.msra.mxu0 0.0
    %1815 = vmatprep.subr.mxu0 0.0
    %1816 = vmatpush1.msra.mxu0 0.0
    %1817 = vmatprep.subr.mxu0 0.0
    %1818 = vmatpush1.msra.mxu0 0.0
    %1819 = vmatprep.subr.mxu0 0.0
    %1820 = vmatpush1.msra.mxu0 0.0
    %1821 = vmatprep.subr.mxu0 0.0
    %1822 = vmatpush1.msra.mxu0 0.0
    %1823 = vmatprep.subr.mxu0 0.0
    %1824 = vmatpush1.msra.mxu0 0.0
    %1825 = vmatprep.subr.mxu0 0.0
    %1826 = vmatpush1.msra.mxu0 0.0
    %1827 = vmatprep.subr.mxu0 0.0
    %1828 = vmatpush1.msra.mxu0 0.0
    %1829 = vmatprep.subr.mxu0 0.0
    %1830 = vmatpush1.msra.mxu0 0.0
    %1831 = vmatprep.subr.mxu0 0.0
    %1832 = vmatpush1.msra.mxu0 %v1152
    %1833 = vmatprep.subr.mxu0 0.0
    %1834 = vmatpush2.msra.mxu0 0.0
    %1835 = vmatprep.subr.mxu0 0.0
    %1836 = vmatpush2.msra.mxu0 0.0
    %1837 = vmatprep.subr.mxu0 0.0
    %1838 = vmatpush2.msra.mxu0 0.0
    %1839 = vmatprep.subr.mxu0 0.0
    %1840 = vmatpush2.msra.mxu0 0.0
    %1841 = vmatprep.subr.mxu0 0.0
    %1842 = vmatpush2.msra.mxu0 0.0
    %1843 = vmatprep.subr.mxu0 0.0
    %1844 = vmatpush2.msra.mxu0 0.0
    %1845 = vmatprep.subr.mxu0 0.0
    %1846 = vmatpush2.msra.mxu0 0.0
    %1847 = vmatprep.subr.mxu0 0.0
    %1848 = vmatpush2.msra.mxu0 0.0
    %1849 = vmatprep.subr.mxu0 0.0
    %1850 = vmatpush2.msra.mxu0 0.0
    %1851 = vmatprep.subr.mxu0 0.0
    %1852 = vmatpush2.msra.mxu0 0.0
    %1853 = vmatprep.subr.mxu0 0.0
    %1854 = vmatpush2.msra.mxu0 0.0
    %1855 = vmatprep.subr.mxu0 0.0
    %1856 = vmatpush2.msra.mxu0 0.0
    %1857 = vmatprep.subr.mxu0 0.0
    %1858 = vmatpush2.msra.mxu0 0.0
    %1859 = vmatprep.subr.mxu0 0.0
    %1860 = vmatpush2.msra.mxu0 0.0
    %1861 = vmatprep.subr.mxu0 0.0
    %1862 = vmatpush2.msra.mxu0 0.0
    %1863 = vmatprep.subr.mxu0 0.0
    %1864 = vmatpush2.msra.mxu0 0.0
    %1865 = vmatprep.mubr.f32.mxu0 0.0
    %1866 = vmatmul.mubr.f32.gmra.mxu0 %v1799
    %v1867 = vpop.f32.mrf.mxu0
    %v1868 = vadd.f32 0.0, %v1867
    %v1869 = vpop.f32.mrf.mxu0
    %1870 = vdwg.mxu0
    %s1871 = sld [smem:[#allocation4 + $0x4]]
    %v1872 = vstv %s1871
    %v1874 = vsel %vm1233, %v1868, 0
    %1876 = vmatprep.subr.mxu0 0.0
    %1877 = vmatpush1.msra.mxu0 0.0
    %1878 = vmatprep.subr.mxu0 0.0
    %1879 = vmatpush1.msra.mxu0 0.0
    %1880 = vmatprep.subr.mxu0 0.0
    %1881 = vmatpush1.msra.mxu0 0.0
    %1882 = vmatprep.subr.mxu0 0.0
    %1883 = vmatpush1.msra.mxu0 0.0
    %1884 = vmatprep.subr.mxu0 0.0
    %1885 = vmatpush1.msra.mxu0 0.0
    %1886 = vmatprep.subr.mxu0 0.0
    %1887 = vmatpush1.msra.mxu0 0.0
    %1888 = vmatprep.subr.mxu0 0.0
    %1889 = vmatpush1.msra.mxu0 0.0
    %1890 = vmatprep.subr.mxu0 0.0
    %1891 = vmatpush1.msra.mxu0 0.0
    %1892 = vmatprep.subr.mxu0 0.0
    %1893 = vmatpush1.msra.mxu0 0.0
    %1894 = vmatprep.subr.mxu0 0.0
    %1895 = vmatpush1.msra.mxu0 0.0
    %1896 = vmatprep.subr.mxu0 0.0
    %1897 = vmatpush1.msra.mxu0 0.0
    %1898 = vmatprep.subr.mxu0 0.0
    %1899 = vmatpush1.msra.mxu0 0.0
    %1900 = vmatprep.subr.mxu0 0.0
    %1901 = vmatpush1.msra.mxu0 0.0
    %1902 = vmatprep.subr.mxu0 0.0
    %1903 = vmatpush1.msra.mxu0 0.0
    %1904 = vmatprep.subr.mxu0 0.0
    %1905 = vmatpush1.msra.mxu0 0.0
    %1906 = vmatprep.subr.mxu0 0.0
    %1907 = vmatpush1.msra.mxu0 %v1874
    %1908 = vmatprep.subr.mxu0 0.0
    %1909 = vmatpush2.msra.mxu0 0.0
    %1910 = vmatprep.subr.mxu0 0.0
    %1911 = vmatpush2.msra.mxu0 0.0
    %1912 = vmatprep.subr.mxu0 0.0
    %1913 = vmatpush2.msra.mxu0 0.0
    %1914 = vmatprep.subr.mxu0 0.0
    %1915 = vmatpush2.msra.mxu0 0.0
    %1916 = vmatprep.subr.mxu0 0.0
    %1917 = vmatpush2.msra.mxu0 0.0
    %1918 = vmatprep.subr.mxu0 0.0
    %1919 = vmatpush2.msra.mxu0 0.0
    %1920 = vmatprep.subr.mxu0 0.0
    %1921 = vmatpush2.msra.mxu0 0.0
    %1922 = vmatprep.subr.mxu0 0.0
    %1923 = vmatpush2.msra.mxu0 0.0
    %1924 = vmatprep.subr.mxu0 0.0
    %1925 = vmatpush2.msra.mxu0 0.0
    %1926 = vmatprep.subr.mxu0 0.0
    %1927 = vmatpush2.msra.mxu0 0.0
    %1928 = vmatprep.subr.mxu0 0.0
    %1929 = vmatpush2.msra.mxu0 0.0
    %1930 = vmatprep.subr.mxu0 0.0
    %1931 = vmatpush2.msra.mxu0 0.0
    %1932 = vmatprep.subr.mxu0 0.0
    %1933 = vmatpush2.msra.mxu0 0.0
    %1934 = vmatprep.subr.mxu0 0.0
    %1935 = vmatpush2.msra.mxu0 0.0
    %1936 = vmatprep.subr.mxu0 0.0
    %1937 = vmatpush2.msra.mxu0 0.0
    %1938 = vmatprep.subr.mxu0 0.0
    %1939 = vmatpush2.msra.mxu0 0.0
    %1940 = vmatprep.mubr.f32.mxu0 0.0
    %1941 = vmatmul.mubr.f32.gmra.mxu0 %v1228
    %v1942 = vpop.f32.mrf.mxu0
    %v1943 = vadd.f32 %v1872, %v1942
    %v1944 = vpop.f32.mrf.mxu0
    %1945 = vmatprep.mubr.f32.mxu0 0.0
    %1946 = vmatmul.mubr.f32.gmra.mxu0 %v1231
    %v1947 = vpop.f32.mrf.mxu0
    %v1948 = vadd.f32 %v1872, %v1947
    %v1949 = vpop.f32.mrf.mxu0
    %1950 = vdwg.mxu0
    %v1951 = vtanh.pop %v1943
    %v1952 = vtanh.pop %v1948
    %s1953 = scalar_lea.vmem %s3, 64
    %1954 = vst [vmem:[%s1953] sm:$0xff] %v1951
    %1955 = vst [vmem:[%s1953 + $0x8] sm:$0x7] %v1952
    %1957 = vrot.lane.b32.xlu0 %v1129, 115
    %v1958 = vpop.permute.xlu0 %1957
    %v1959 = vsel %vm1147, %v1958, 0
    %1961 = vmatprep.subr.mxu0 0.0
    %1962 = vmatpush1.msra.mxu0 0.0
    %1963 = vmatprep.subr.mxu0 0.0
    %1964 = vmatpush1.msra.mxu0 0.0
    %1965 = vmatprep.subr.mxu0 0.0
    %1966 = vmatpush1.msra.mxu0 0.0
    %1967 = vmatprep.subr.mxu0 0.0
    %1968 = vmatpush1.msra.mxu0 0.0
    %1969 = vmatprep.subr.mxu0 0.0
    %1970 = vmatpush1.msra.mxu0 0.0
    %1971 = vmatprep.subr.mxu0 0.0
    %1972 = vmatpush1.msra.mxu0 0.0
    %1973 = vmatprep.subr.mxu0 0.0
    %1974 = vmatpush1.msra.mxu0 0.0
    %1975 = vmatprep.subr.mxu0 0.0
    %1976 = vmatpush1.msra.mxu0 0.0
    %1977 = vmatprep.subr.mxu0 0.0
    %1978 = vmatpush1.msra.mxu0 0.0
    %1979 = vmatprep.subr.mxu0 0.0
    %1980 = vmatpush1.msra.mxu0 0.0
    %1981 = vmatprep.subr.mxu0 0.0
    %1982 = vmatpush1.msra.mxu0 0.0
    %1983 = vmatprep.subr.mxu0 0.0
    %1984 = vmatpush1.msra.mxu0 0.0
    %1985 = vmatprep.subr.mxu0 0.0
    %1986 = vmatpush1.msra.mxu0 0.0
    %1987 = vmatprep.subr.mxu0 0.0
    %1988 = vmatpush1.msra.mxu0 0.0
    %1989 = vmatprep.subr.mxu0 0.0
    %1990 = vmatpush1.msra.mxu0 0.0
    %1991 = vmatprep.subr.mxu0 0.0
    %1992 = vmatpush1.msra.mxu0 %v1152
    %1993 = vmatprep.subr.mxu0 0.0
    %1994 = vmatpush2.msra.mxu0 0.0
    %1995 = vmatprep.subr.mxu0 0.0
    %1996 = vmatpush2.msra.mxu0 0.0
    %1997 = vmatprep.subr.mxu0 0.0
    %1998 = vmatpush2.msra.mxu0 0.0
    %1999 = vmatprep.subr.mxu0 0.0
    %2000 = vmatpush2.msra.mxu0 0.0
    %2001 = vmatprep.subr.mxu0 0.0
    %2002 = vmatpush2.msra.mxu0 0.0
    %2003 = vmatprep.subr.mxu0 0.0
    %2004 = vmatpush2.msra.mxu0 0.0
    %2005 = vmatprep.subr.mxu0 0.0
    %2006 = vmatpush2.msra.mxu0 0.0
    %2007 = vmatprep.subr.mxu0 0.0
    %2008 = vmatpush2.msra.mxu0 0.0
    %2009 = vmatprep.subr.mxu0 0.0
    %2010 = vmatpush2.msra.mxu0 0.0
    %2011 = vmatprep.subr.mxu0 0.0
    %2012 = vmatpush2.msra.mxu0 0.0
    %2013 = vmatprep.subr.mxu0 0.0
    %2014 = vmatpush2.msra.mxu0 0.0
    %2015 = vmatprep.subr.mxu0 0.0
    %2016 = vmatpush2.msra.mxu0 0.0
    %2017 = vmatprep.subr.mxu0 0.0
    %2018 = vmatpush2.msra.mxu0 0.0
    %2019 = vmatprep.subr.mxu0 0.0
    %2020 = vmatpush2.msra.mxu0 0.0
    %2021 = vmatprep.subr.mxu0 0.0
    %2022 = vmatpush2.msra.mxu0 0.0
    %2023 = vmatprep.subr.mxu0 0.0
    %2024 = vmatpush2.msra.mxu0 0.0
    %2025 = vmatprep.mubr.f32.mxu0 0.0
    %2026 = vmatmul.mubr.f32.gmra.mxu0 %v1959
    %v2027 = vpop.f32.mrf.mxu0
    %v2028 = vadd.f32 0.0, %v2027
    %v2029 = vpop.f32.mrf.mxu0
    %2030 = vdwg.mxu0
    %s2031 = sld [smem:[#allocation4 + $0x5]]
    %v2032 = vstv %s2031
    %v2034 = vsel %vm1233, %v2028, 0
    %2036 = vmatprep.subr.mxu0 0.0
    %2037 = vmatpush1.msra.mxu0 0.0
    %2038 = vmatprep.subr.mxu0 0.0
    %2039 = vmatpush1.msra.mxu0 0.0
    %2040 = vmatprep.subr.mxu0 0.0
    %2041 = vmatpush1.msra.mxu0 0.0
    %2042 = vmatprep.subr.mxu0 0.0
    %2043 = vmatpush1.msra.mxu0 0.0
    %2044 = vmatprep.subr.mxu0 0.0
    %2045 = vmatpush1.msra.mxu0 0.0
    %2046 = vmatprep.subr.mxu0 0.0
    %2047 = vmatpush1.msra.mxu0 0.0
    %2048 = vmatprep.subr.mxu0 0.0
    %2049 = vmatpush1.msra.mxu0 0.0
    %2050 = vmatprep.subr.mxu0 0.0
    %2051 = vmatpush1.msra.mxu0 0.0
    %2052 = vmatprep.subr.mxu0 0.0
    %2053 = vmatpush1.msra.mxu0 0.0
    %2054 = vmatprep.subr.mxu0 0.0
    %2055 = vmatpush1.msra.mxu0 0.0
    %2056 = vmatprep.subr.mxu0 0.0
    %2057 = vmatpush1.msra.mxu0 0.0
    %2058 = vmatprep.subr.mxu0 0.0
    %2059 = vmatpush1.msra.mxu0 0.0
    %2060 = vmatprep.subr.mxu0 0.0
    %2061 = vmatpush1.msra.mxu0 0.0
    %2062 = vmatprep.subr.mxu0 0.0
    %2063 = vmatpush1.msra.mxu0 0.0
    %2064 = vmatprep.subr.mxu0 0.0
    %2065 = vmatpush1.msra.mxu0 0.0
    %2066 = vmatprep.subr.mxu0 0.0
    %2067 = vmatpush1.msra.mxu0 %v2034
    %2068 = vmatprep.subr.mxu0 0.0
    %2069 = vmatpush2.msra.mxu0 0.0
    %2070 = vmatprep.subr.mxu0 0.0
    %2071 = vmatpush2.msra.mxu0 0.0
    %2072 = vmatprep.subr.mxu0 0.0
    %2073 = vmatpush2.msra.mxu0 0.0
    %2074 = vmatprep.subr.mxu0 0.0
    %2075 = vmatpush2.msra.mxu0 0.0
    %2076 = vmatprep.subr.mxu0 0.0
    %2077 = vmatpush2.msra.mxu0 0.0
    %2078 = vmatprep.subr.mxu0 0.0
    %2079 = vmatpush2.msra.mxu0 0.0
    %2080 = vmatprep.subr.mxu0 0.0
    %2081 = vmatpush2.msra.mxu0 0.0
    %2082 = vmatprep.subr.mxu0 0.0
    %2083 = vmatpush2.msra.mxu0 0.0
    %2084 = vmatprep.subr.mxu0 0.0
    %2085 = vmatpush2.msra.mxu0 0.0
    %2086 = vmatprep.subr.mxu0 0.0
    %2087 = vmatpush2.msra.mxu0 0.0
    %2088 = vmatprep.subr.mxu0 0.0
    %2089 = vmatpush2.msra.mxu0 0.0
    %2090 = vmatprep.subr.mxu0 0.0
    %2091 = vmatpush2.msra.mxu0 0.0
    %2092 = vmatprep.subr.mxu0 0.0
    %2093 = vmatpush2.msra.mxu0 0.0
    %2094 = vmatprep.subr.mxu0 0.0
    %2095 = vmatpush2.msra.mxu0 0.0
    %2096 = vmatprep.subr.mxu0 0.0
    %2097 = vmatpush2.msra.mxu0 0.0
    %2098 = vmatprep.subr.mxu0 0.0
    %2099 = vmatpush2.msra.mxu0 0.0
    %2100 = vmatprep.mubr.f32.mxu0 0.0
    %2101 = vmatmul.mubr.f32.gmra.mxu0 %v1228
    %v2102 = vpop.f32.mrf.mxu0
    %v2103 = vadd.f32 %v2032, %v2102
    %v2104 = vpop.f32.mrf.mxu0
    %2105 = vmatprep.mubr.f32.mxu0 0.0
    %2106 = vmatmul.mubr.f32.gmra.mxu0 %v1231
    %v2107 = vpop.f32.mrf.mxu0
    %v2108 = vadd.f32 %v2032, %v2107
    %v2109 = vpop.f32.mrf.mxu0
    %2110 = vdwg.mxu0
    %v2111 = vtanh.pop %v2103
    %v2112 = vtanh.pop %v2108
    %s2113 = scalar_lea.vmem %s3, 80
    %2114 = vst [vmem:[%s2113] sm:$0xff] %v2111
    %2115 = vst [vmem:[%s2113 + $0x8] sm:$0x7] %v2112
    // Predicated region
    $region22: #{conv_transpose_tanh.1} parent=1 // pred_check
      _
    $region23: #{conv_transpose_tanh.1} parent=1 // pred_check_branch
      %2117 = sbr.rel (0) target = $region25
    $region24: #{conv_transpose_tanh.1} parent=1 // pred_region
      _
    $region25: #{conv_transpose_tanh.1} parent=1 // pred_fallthru
      _
    // Predicated region
    $region26: #{conv_transpose_tanh.1} parent=1 // pred_check
      _
    $region27: #{conv_transpose_tanh.1} parent=1 // pred_check_branch
      %2119 = sbr.rel (0) target = $region29
    $region28: #{conv_transpose_tanh.1} parent=1 // pred_region
      _
    $region29: #{conv_transpose_tanh.1} parent=1 // pred_fallthru
      _
    %2120 = vsyncpa [#allocation3], 1
    %2121 = vsyncpa [#allocation5], 1

</llo_original>
